<compile_context>
chip_gen: v5e
topology: v5e:2x2
jax: 0.10.0
libtpu: 0.0.40
codegen_flags: <defaults>
</compile_context>

<pallas_src>
import functools

import jax
import jax.numpy as jnp
from jax.experimental import pallas as pl
from jax.experimental.pallas import tpu as pltpu


# ----------------------------- Pallas kernel -----------------------------
def _conv_taps_lrelu_kernel(x_ref, w_ref, b_ref, o_ref, *,
                            K, Wp, M, dilation, neg_slope):
    # x_ref: (1, L, Cin)        bf16  flattened zero-padded image (one batch elem)
    # w_ref: (K*K, Cin, Cpad)   bf16  per-tap weight matrices
    # b_ref: (1, Cpad)          f32   bias row
    # o_ref: (1, M, Cpad)       f32   lane-dense dense-output slab (M = Ho_d*Wp)
    cpad = o_ref.shape[-1]
    acc = jnp.zeros((M, cpad), jnp.float32)
    for kh in range(K):
        for kw in range(K):
            off = (kh * Wp + kw) * dilation          # static row offset of this tap
            lhs = x_ref[0, off:off + M, :]           # (M, Cin) bf16, contiguous rows
            acc = acc + jnp.dot(lhs, w_ref[kh * K + kw],
                                preferred_element_type=jnp.float32)
    acc = acc + b_ref[...]                           # f32 epilogue
    o_ref[0] = jnp.where(acc >= 0.0, acc, neg_slope * acc).astype(o_ref.dtype)


# ------------------------------ JAX wrapper ------------------------------
def conv2d_layer_forward(x, weight, bias, *, stride=1, padding=1, dilation=1,
                         neg_slope=0.2):
    """x: (N, Cin, H, W) NCHW; weight: (Cout, Cin, K, K); bias: (Cout,)."""
    N, Cin, H, W = x.shape
    Cout, Cin_w, K, K2 = weight.shape
    assert K == K2 and Cin_w == Cin

    # --- glue: ZeroPad2d + NHWC layout + row-major flatten (single HBM pass) ---
    x_nhwc = jnp.transpose(x, (0, 2, 3, 1))
    Hp, Wp = H + 2 * padding, W + 2 * padding
    xp = jnp.pad(x_nhwc, ((0, 0), (padding, padding), (padding, padding), (0, 0)))

    Ho_d = Hp - dilation * (K - 1)          # dense (stride-1) output extents
    Wo_d = Wp - dilation * (K - 1)
    Ho = (Ho_d - 1) // stride + 1           # strided output extents
    Wo = (Wo_d - 1) // stride + 1

    M = Ho_d * Wp                           # GEMM rows per image (full-width trick)
    extra = dilation * (K - 1)              # tail pad so every tap slice is in-bounds
    L = Hp * Wp + extra

    x_flat = xp.reshape(N, Hp * Wp, Cin)
    x_flat = jnp.pad(x_flat, ((0, 0), (0, extra), (0, 0))).astype(jnp.bfloat16)

    # Lane-dense output channels: pad Cout up to a multiple of 128.
    Cpad = ((Cout + 127) // 128) * 128
    w_taps = jnp.transpose(weight, (2, 3, 1, 0)).reshape(K * K, Cin, Cout)
    w_taps = jnp.pad(w_taps, ((0, 0), (0, 0), (0, Cpad - Cout))).astype(jnp.bfloat16)
    b_row = jnp.pad(bias.astype(jnp.float32).reshape(1, Cout),
                    ((0, 0), (0, Cpad - Cout)))

    kernel = functools.partial(_conv_taps_lrelu_kernel, K=K, Wp=Wp, M=M,
                               dilation=dilation, neg_slope=neg_slope)

    flops = 2 * N * M * K * K * Cin * Cpad
    bytes_accessed = (x_flat.size * 2 + w_taps.size * 2 + b_row.size * 4
                      + N * M * Cpad * 4)

    out = pl.pallas_call(
        kernel,
        out_shape=jax.ShapeDtypeStruct((N, M, Cpad), jnp.float32),
        grid_spec=pltpu.PrefetchScalarGridSpec(
            num_scalar_prefetch=0,
            grid=(N,),
            in_specs=[
                pl.BlockSpec((1, L, Cin), lambda n: (n, 0, 0)),
                pl.BlockSpec((K * K, Cin, Cpad), lambda n: (0, 0, 0)),
                pl.BlockSpec((1, Cpad), lambda n: (0, 0)),
            ],
            out_specs=pl.BlockSpec((1, M, Cpad), lambda n: (n, 0, 0)),
        ),
        compiler_params=pltpu.CompilerParams(
            dimension_semantics=("parallel",),
            vmem_limit_bytes=48 * 1024 * 1024,
        ),
        cost_estimate=pl.CostEstimate(flops=flops, transcendentals=0,
                                      bytes_accessed=bytes_accessed),
    )(x_flat, w_taps, b_row)

    # Strip channel padding and the wrap-around columns, restore NCHW.
    out = out[:, :, :Cout].reshape(N, Ho_d, Wp, Cout)[:, :, :Wo_d, :]
    if stride > 1:
        # TODO(synk): add a strided-output kernel; dense-then-subsample is
        # correct but overcomputes by ~stride^2.
        out = out[:, ::stride, ::stride, :]
        out = out[:, :Ho, :Wo, :]
    return jnp.transpose(out, (0, 3, 1, 2))


# --------------------------------- main ----------------------------------
if __name__ == "__main__":
    # Small shapes consistent with the module: batch=2, Cin=4, Cout=8, 16x16, k=3.
    N, Cin, Cout, H, W, K = 2, 4, 8, 16, 16, 3
    stride, padding, dilation = 1, 1, 1

    key = jax.random.PRNGKey(0)
    kx, kw, kb = jax.random.split(key, 3)
    x = jax.random.normal(kx, (N, Cin, H, W), dtype=jnp.float32)
    fan_in = Cin * K * K
    bound = 1.0 / (fan_in ** 0.5)
    weight = jax.random.uniform(kw, (Cout, Cin, K, K), jnp.float32, -bound, bound)
    bias = jax.random.uniform(kb, (Cout,), jnp.float32, -bound, bound)

    y = conv2d_layer_forward(x, weight, bias,
                             stride=stride, padding=padding, dilation=dilation)
    y = jax.block_until_ready(y)

    # Reference: XLA conv + LeakyReLU on bf16-rounded inputs (kernel stores x/w
    # in bf16 with f32 accumulation), f32 accumulate.
    x_b = x.astype(jnp.bfloat16).astype(jnp.float32)
    w_b = weight.astype(jnp.bfloat16).astype(jnp.float32)
    ref = jax.lax.conv_general_dilated(
        x_b, w_b, window_strides=(stride, stride),
        padding=[(padding, padding), (padding, padding)],
        rhs_dilation=(dilation, dilation),
        dimension_numbers=("NCHW", "OIHW", "NCHW"),
        precision=jax.lax.Precision.HIGHEST,
    ) + bias.reshape(1, Cout, 1, 1)
    ref = jnp.where(ref >= 0, ref, 0.2 * ref)

    assert y.shape == (N, Cout, H, W), y.shape
    assert jnp.allclose(y, ref, atol=1e-3, rtol=1e-3), float(jnp.max(jnp.abs(y - ref)))

    print("KERNEL_OK")
</pallas_src>

<mosaic_0001>
module attributes {stable_mosaic.version = 11 : i64} {
  func.func @_conv_taps_lrelu_kernel(%arg0: i32, %arg1: memref<1x326x4xbf16, #tpu.memory_space<vmem>>, %arg2: memref<9x4x128xbf16, #tpu.memory_space<vmem>>, %arg3: memref<1x128xf32, #tpu.memory_space<vmem>>, %arg4: memref<1x288x128xf32, #tpu.memory_space<vmem>>) attributes {dimension_semantics = [#tpu.dimension_semantics<parallel>], iteration_bounds = array<i64: 2>, scalar_prefetch = 0 : i64, scratch_operands = 0 : i64, tpu.core_type = #tpu.core_type<tc>, window_params = [{transform_indices = @transform_0, window_bounds = array<i64: 1, 326, 4>}, {pipeline_mode = #tpu.pipeline_mode<synchronous>, transform_indices = @transform_1, window_bounds = array<i64: 9, 4, 128>}, {pipeline_mode = #tpu.pipeline_mode<synchronous>, transform_indices = @transform_2, window_bounds = array<i64: 1, 128>}, {transform_indices = @transform_3, window_bounds = array<i64: 1, 288, 128>}]} {
    %cst = arith.constant 0.000000e+00 : f32
    %0 = vector.broadcast %cst : f32 to vector<288x128xf32>
    %c0 = arith.constant 0 : index
    %c0_0 = arith.constant 0 : index
    %c0_1 = arith.constant 0 : index
    %1 = vector.load %arg1[%c0, %c0_0, %c0_1] : memref<1x326x4xbf16, #tpu.memory_space<vmem>>, vector<1x288x4xbf16>
    %2 = vector.shape_cast %1 : vector<1x288x4xbf16> to vector<288x4xbf16>
    %c0_2 = arith.constant 0 : index
    %c0_3 = arith.constant 0 : index
    %c0_4 = arith.constant 0 : index
    %3 = vector.load %arg2[%c0_2, %c0_3, %c0_4] : memref<9x4x128xbf16, #tpu.memory_space<vmem>>, vector<1x4x128xbf16>
    %4 = vector.shape_cast %3 : vector<1x4x128xbf16> to vector<4x128xbf16>
    %cst_5 = arith.constant dense<0.000000e+00> : vector<288x128xf32>
    %5 = tpu.matmul %2, %4, %cst_5 {dimension_numbers = #tpu.dot_dimension_numbers<[1], [0], [0], [1], [0, 0, 1, 1], [], []>} : vector<288x4xbf16>, vector<4x128xbf16>, vector<288x128xf32> -> vector<288x128xf32>
    %6 = arith.addf %0, %5 : vector<288x128xf32>
    %c0_6 = arith.constant 0 : index
    %c1 = arith.constant 1 : index
    %c0_7 = arith.constant 0 : index
    %7 = vector.load %arg1[%c0_6, %c1, %c0_7] : memref<1x326x4xbf16, #tpu.memory_space<vmem>>, vector<1x288x4xbf16>
    %8 = vector.shape_cast %7 : vector<1x288x4xbf16> to vector<288x4xbf16>
    %c1_8 = arith.constant 1 : index
    %c0_9 = arith.constant 0 : index
    %c0_10 = arith.constant 0 : index
    %9 = vector.load %arg2[%c1_8, %c0_9, %c0_10] : memref<9x4x128xbf16, #tpu.memory_space<vmem>>, vector<1x4x128xbf16>
    %10 = vector.shape_cast %9 : vector<1x4x128xbf16> to vector<4x128xbf16>
    %cst_11 = arith.constant dense<0.000000e+00> : vector<288x128xf32>
    %11 = tpu.matmul %8, %10, %cst_11 {dimension_numbers = #tpu.dot_dimension_numbers<[1], [0], [0], [1], [0, 0, 1, 1], [], []>} : vector<288x4xbf16>, vector<4x128xbf16>, vector<288x128xf32> -> vector<288x128xf32>
    %12 = arith.addf %6, %11 : vector<288x128xf32>
    %c0_12 = arith.constant 0 : index
    %c2 = arith.constant 2 : index
    %c0_13 = arith.constant 0 : index
    %13 = vector.load %arg1[%c0_12, %c2, %c0_13] : memref<1x326x4xbf16, #tpu.memory_space<vmem>>, vector<1x288x4xbf16>
    %14 = vector.shape_cast %13 : vector<1x288x4xbf16> to vector<288x4xbf16>
    %c2_14 = arith.constant 2 : index
    %c0_15 = arith.constant 0 : index
    %c0_16 = arith.constant 0 : index
    %15 = vector.load %arg2[%c2_14, %c0_15, %c0_16] : memref<9x4x128xbf16, #tpu.memory_space<vmem>>, vector<1x4x128xbf16>
    %16 = vector.shape_cast %15 : vector<1x4x128xbf16> to vector<4x128xbf16>
    %cst_17 = arith.constant dense<0.000000e+00> : vector<288x128xf32>
    %17 = tpu.matmul %14, %16, %cst_17 {dimension_numbers = #tpu.dot_dimension_numbers<[1], [0], [0], [1], [0, 0, 1, 1], [], []>} : vector<288x4xbf16>, vector<4x128xbf16>, vector<288x128xf32> -> vector<288x128xf32>
    %18 = arith.addf %12, %17 : vector<288x128xf32>
    %c0_18 = arith.constant 0 : index
    %c18 = arith.constant 18 : index
    %c0_19 = arith.constant 0 : index
    %19 = vector.load %arg1[%c0_18, %c18, %c0_19] : memref<1x326x4xbf16, #tpu.memory_space<vmem>>, vector<1x288x4xbf16>
    %20 = vector.shape_cast %19 : vector<1x288x4xbf16> to vector<288x4xbf16>
    %c3 = arith.constant 3 : index
    %c0_20 = arith.constant 0 : index
    %c0_21 = arith.constant 0 : index
    %21 = vector.load %arg2[%c3, %c0_20, %c0_21] : memref<9x4x128xbf16, #tpu.memory_space<vmem>>, vector<1x4x128xbf16>
    %22 = vector.shape_cast %21 : vector<1x4x128xbf16> to vector<4x128xbf16>
    %cst_22 = arith.constant dense<0.000000e+00> : vector<288x128xf32>
    %23 = tpu.matmul %20, %22, %cst_22 {dimension_numbers = #tpu.dot_dimension_numbers<[1], [0], [0], [1], [0, 0, 1, 1], [], []>} : vector<288x4xbf16>, vector<4x128xbf16>, vector<288x128xf32> -> vector<288x128xf32>
    %24 = arith.addf %18, %23 : vector<288x128xf32>
    %c0_23 = arith.constant 0 : index
    %c19 = arith.constant 19 : index
    %c0_24 = arith.constant 0 : index
    %25 = vector.load %arg1[%c0_23, %c19, %c0_24] : memref<1x326x4xbf16, #tpu.memory_space<vmem>>, vector<1x288x4xbf16>
    %26 = vector.shape_cast %25 : vector<1x288x4xbf16> to vector<288x4xbf16>
    %c4 = arith.constant 4 : index
    %c0_25 = arith.constant 0 : index
    %c0_26 = arith.constant 0 : index
    %27 = vector.load %arg2[%c4, %c0_25, %c0_26] : memref<9x4x128xbf16, #tpu.memory_space<vmem>>, vector<1x4x128xbf16>
    %28 = vector.shape_cast %27 : vector<1x4x128xbf16> to vector<4x128xbf16>
    %cst_27 = arith.constant dense<0.000000e+00> : vector<288x128xf32>
    %29 = tpu.matmul %26, %28, %cst_27 {dimension_numbers = #tpu.dot_dimension_numbers<[1], [0], [0], [1], [0, 0, 1, 1], [], []>} : vector<288x4xbf16>, vector<4x128xbf16>, vector<288x128xf32> -> vector<288x128xf32>
    %30 = arith.addf %24, %29 : vector<288x128xf32>
    %c0_28 = arith.constant 0 : index
    %c20 = arith.constant 20 : index
    %c0_29 = arith.constant 0 : index
    %31 = vector.load %arg1[%c0_28, %c20, %c0_29] : memref<1x326x4xbf16, #tpu.memory_space<vmem>>, vector<1x288x4xbf16>
    %32 = vector.shape_cast %31 : vector<1x288x4xbf16> to vector<288x4xbf16>
    %c5 = arith.constant 5 : index
    %c0_30 = arith.constant 0 : index
    %c0_31 = arith.constant 0 : index
    %33 = vector.load %arg2[%c5, %c0_30, %c0_31] : memref<9x4x128xbf16, #tpu.memory_space<vmem>>, vector<1x4x128xbf16>
    %34 = vector.shape_cast %33 : vector<1x4x128xbf16> to vector<4x128xbf16>
    %cst_32 = arith.constant dense<0.000000e+00> : vector<288x128xf32>
    %35 = tpu.matmul %32, %34, %cst_32 {dimension_numbers = #tpu.dot_dimension_numbers<[1], [0], [0], [1], [0, 0, 1, 1], [], []>} : vector<288x4xbf16>, vector<4x128xbf16>, vector<288x128xf32> -> vector<288x128xf32>
    %36 = arith.addf %30, %35 : vector<288x128xf32>
    %c0_33 = arith.constant 0 : index
    %c36 = arith.constant 36 : index
    %c0_34 = arith.constant 0 : index
    %37 = vector.load %arg1[%c0_33, %c36, %c0_34] : memref<1x326x4xbf16, #tpu.memory_space<vmem>>, vector<1x288x4xbf16>
    %38 = vector.shape_cast %37 : vector<1x288x4xbf16> to vector<288x4xbf16>
    %c6 = arith.constant 6 : index
    %c0_35 = arith.constant 0 : index
    %c0_36 = arith.constant 0 : index
    %39 = vector.load %arg2[%c6, %c0_35, %c0_36] : memref<9x4x128xbf16, #tpu.memory_space<vmem>>, vector<1x4x128xbf16>
    %40 = vector.shape_cast %39 : vector<1x4x128xbf16> to vector<4x128xbf16>
    %cst_37 = arith.constant dense<0.000000e+00> : vector<288x128xf32>
    %41 = tpu.matmul %38, %40, %cst_37 {dimension_numbers = #tpu.dot_dimension_numbers<[1], [0], [0], [1], [0, 0, 1, 1], [], []>} : vector<288x4xbf16>, vector<4x128xbf16>, vector<288x128xf32> -> vector<288x128xf32>
    %42 = arith.addf %36, %41 : vector<288x128xf32>
    %c0_38 = arith.constant 0 : index
    %c37 = arith.constant 37 : index
    %c0_39 = arith.constant 0 : index
    %43 = vector.load %arg1[%c0_38, %c37, %c0_39] : memref<1x326x4xbf16, #tpu.memory_space<vmem>>, vector<1x288x4xbf16>
    %44 = vector.shape_cast %43 : vector<1x288x4xbf16> to vector<288x4xbf16>
    %c7 = arith.constant 7 : index
    %c0_40 = arith.constant 0 : index
    %c0_41 = arith.constant 0 : index
    %45 = vector.load %arg2[%c7, %c0_40, %c0_41] : memref<9x4x128xbf16, #tpu.memory_space<vmem>>, vector<1x4x128xbf16>
    %46 = vector.shape_cast %45 : vector<1x4x128xbf16> to vector<4x128xbf16>
    %cst_42 = arith.constant dense<0.000000e+00> : vector<288x128xf32>
    %47 = tpu.matmul %44, %46, %cst_42 {dimension_numbers = #tpu.dot_dimension_numbers<[1], [0], [0], [1], [0, 0, 1, 1], [], []>} : vector<288x4xbf16>, vector<4x128xbf16>, vector<288x128xf32> -> vector<288x128xf32>
    %48 = arith.addf %42, %47 : vector<288x128xf32>
    %c0_43 = arith.constant 0 : index
    %c38 = arith.constant 38 : index
    %c0_44 = arith.constant 0 : index
    %49 = vector.load %arg1[%c0_43, %c38, %c0_44] : memref<1x326x4xbf16, #tpu.memory_space<vmem>>, vector<1x288x4xbf16>
    %50 = vector.shape_cast %49 : vector<1x288x4xbf16> to vector<288x4xbf16>
    %c8 = arith.constant 8 : index
    %c0_45 = arith.constant 0 : index
    %c0_46 = arith.constant 0 : index
    %51 = vector.load %arg2[%c8, %c0_45, %c0_46] : memref<9x4x128xbf16, #tpu.memory_space<vmem>>, vector<1x4x128xbf16>
    %52 = vector.shape_cast %51 : vector<1x4x128xbf16> to vector<4x128xbf16>
    %cst_47 = arith.constant dense<0.000000e+00> : vector<288x128xf32>
    %53 = tpu.matmul %50, %52, %cst_47 {dimension_numbers = #tpu.dot_dimension_numbers<[1], [0], [0], [1], [0, 0, 1, 1], [], []>} : vector<288x4xbf16>, vector<4x128xbf16>, vector<288x128xf32> -> vector<288x128xf32>
    %54 = arith.addf %48, %53 : vector<288x128xf32>
    %c0_48 = arith.constant 0 : index
    %c0_49 = arith.constant 0 : index
    %55 = vector.load %arg3[%c0_48, %c0_49] : memref<1x128xf32, #tpu.memory_space<vmem>>, vector<1x128xf32>
    %56 = vector.broadcast %55 : vector<1x128xf32> to vector<288x128xf32>
    %57 = arith.addf %54, %56 : vector<288x128xf32>
    %cst_50 = arith.constant 0.000000e+00 : f32
    %58 = vector.broadcast %cst_50 : f32 to vector<288x128xf32>
    %59 = arith.cmpf oge, %57, %58 : vector<288x128xf32>
    %cst_51 = arith.constant 2.000000e-01 : f32
    %60 = vector.broadcast %cst_51 : f32 to vector<288x128xf32>
    %61 = arith.mulf %60, %57 : vector<288x128xf32>
    %62 = arith.select %59, %57, %61 : vector<288x128xi1>, vector<288x128xf32>
    %c0_52 = arith.constant 0 : index
    %c0_53 = arith.constant 0 : index
    %c0_54 = arith.constant 0 : index
    %63 = vector.load %arg4[%c0_52, %c0_53, %c0_54] : memref<1x288x128xf32, #tpu.memory_space<vmem>>, vector<1x288x128xf32>
    %64 = vector.shape_cast %63 : vector<1x288x128xf32> to vector<288x128xf32>
    %65 = vector.shape_cast %62 : vector<288x128xf32> to vector<1x288x128xf32>
    tpu.vector_store %arg4[%c0_52, %c0_53, %c0_54], %65 {strides = array<i32>} : memref<1x288x128xf32, #tpu.memory_space<vmem>>, vector<1x288x128xf32>,
    return
  }
  func.func @transform_0(%arg0: i32) -> (i32, i32, i32) {
    %c0_i32 = arith.constant 0 : i32
    %c0_i32_0 = arith.constant 0 : i32
    %c0_i32_1 = arith.constant 0 : i32
    return %arg0, %c0_i32, %c0_i32_0 : i32, i32, i32
  }
  func.func @transform_1(%arg0: i32) -> (i32, i32, i32) {
    %c0_i32 = arith.constant 0 : i32
    %c0_i32_0 = arith.constant 0 : i32
    %c0_i32_1 = arith.constant 0 : i32
    %c0_i32_2 = arith.constant 0 : i32
    return %c0_i32, %c0_i32_0, %c0_i32_1 : i32, i32, i32
  }
  func.func @transform_2(%arg0: i32) -> (i32, i32) {
    %c0_i32 = arith.constant 0 : i32
    %c0_i32_0 = arith.constant 0 : i32
    %c0_i32_1 = arith.constant 0 : i32
    return %c0_i32, %c0_i32_0 : i32, i32
  }
  func.func @transform_3(%arg0: i32) -> (i32, i32, i32) {
    %c0_i32 = arith.constant 0 : i32
    %c0_i32_0 = arith.constant 0 : i32
    %c0_i32_1 = arith.constant 0 : i32
    return %arg0, %c0_i32, %c0_i32_0 : i32, i32, i32
  }
}

</mosaic_0001>

<llo_original>
// kernel: tpu_custom_call.1
$region0: #{tpu_custom_call.1}
  #allocation0 [shape = 'u32[]', space=smem, size = 0x4, offset = 0x4, fixed_abs, tag = 'smem constant byte address 0x4 - core index']
  #allocation1 [shape = 'u32[72,128]{1,0:T(1,128)}', space=vmem, size = 0x9000, scoped, tag = 'internal scratch']
  %s0 = inlined_call_operand.vmem [shape: bf16[2,326,4], index: 0, kind: input, shape index: {}]
  %s1 = inlined_call_operand.vmem [shape: bf16[9,4,128], index: 1, kind: input, shape index: {}]
  %s2 = inlined_call_operand.vmem [shape: f32[1,128], index: 2, kind: input, shape index: {}]
  %s3 = inlined_call_operand.hbm [shape: f32[2,288,128], index: 3, kind: output, shape index: {}]
  %s4 = sld [smem:[#allocation0]]
  $region45: #{tpu_custom_call.1} parent=0
    _
  %s6 = ssub.s32 1, %s4
  %s7 = scalar_select 0, %s6, %s4
  $region1: #{tpu_custom_call.1} parent=0
    #allocation2 [shape = 'u8[294912]{0}', space=vmem, size = 0x48000, scoped, tag = 'output window, operand 0']
    #allocation3 [shape = 's32[2]{0}', space=sflag, size = 0x8, scoped, tag = 'scoped memory for tpu_custom_call.1']
    %8 = vsyncpa [#allocation3], 0
    %s9 = scalar_lea.sflag [#allocation3], 1
    %10 = vsyncpa %s9, 0
    loop: start=0, step=1, limit=4
    $region2: #{tpu_custom_call.1} parent=1 // loop_pre_header
      _
    $region3: #{tpu_custom_call.1} parent=1 // loop_header
      %s12 = sphi 0, %s16
      %p13 = scmp.ge.s32.totalorder %s12, 4
      %s22 = sphi 0, %s24
      %s25 = sphi 0, %s22
      %s26 = sphi 0, %s25
      %s42 = sphi 0, %s26
      %s46 = sphi 0, %s46
      %s48 = sphi 0, %s46
      %s49 = sphi 0, %s48
      %s63 = sphi 0, %s49
      %s67 = sphi 0, %s67
      %s69 = sphi 0, %s67
      %s70 = sphi 0, %s69
      %s84 = sphi 0, %s70
      %s90 = sphi 0, %s92
      %s93 = sphi 0, %s90
      %s94 = sphi 0, %s93
      %s110 = sphi 0, %s94
    $region4: #{tpu_custom_call.1} parent=1 // loop_header_branch
      %15 = sbr.rel (%p13) target = $region8
    $region5: #{tpu_custom_call.1} parent=1 // loop_body
      %s17 = ssub.s32 %s12, 1
      %s18 = ssub.s32 %s12, 2
      %s19 = sadd.s32 %s12, 1
      %s20 = ssub.s32 %s12, %s19
      %p21 = scmp.eq.s32.totalorder %s20, 0
      %s23 = sadd.s32 %s22, 1
      %s24 = scalar_select %p21, %s22, %s23
      %p27 = pneg %p21
      %p28 = scmp.eq.s32.totalorder %s12, 1
      %p29 = por %p27, %p28
      %p30 = scmp.ne.s32.totalorder %s22, %s25
      %p31 = scmp.eq.s32.totalorder %s12, 0
      %p32 = por %p30, %p31
      %p33 = scmp.ne.s32.totalorder %s22, %s25
      %p34 = scmp.eq.s32.totalorder %s17, 1
      %p35 = por %p33, %p34
      %p36 = scmp.ne.s32.totalorder %s25, %s26
      %p37 = scmp.eq.s32.totalorder %s17, 0
      %p38 = por %p36, %p37
      %p39 = scmp.ne.s32.totalorder %s25, %s26
      %p40 = scmp.eq.s32.totalorder %s18, 1
      %p41 = por %p39, %p40
      %p43 = scmp.ne.s32.totalorder %s26, %s42
      %p44 = scmp.eq.s32.totalorder %s18, 0
      %p45 = por %p43, %p44
      %s47 = sadd.s32 %s46, 1
      %p50 = scmp.eq.s32.totalorder %s12, 1
      %p51 = scmp.ne.s32.totalorder %s46, %s48
      %p52 = scmp.eq.s32.totalorder %s12, 0
      %p53 = por %p51, %p52
      %p54 = scmp.ne.s32.totalorder %s46, %s48
      %p55 = scmp.eq.s32.totalorder %s17, 1
      %p56 = por %p54, %p55
      %p57 = scmp.ne.s32.totalorder %s48, %s49
      %p58 = scmp.eq.s32.totalorder %s17, 0
      %p59 = por %p57, %p58
      %p60 = scmp.ne.s32.totalorder %s48, %s49
      %p61 = scmp.eq.s32.totalorder %s18, 1
      %p62 = por %p60, %p61
      %p64 = scmp.ne.s32.totalorder %s49, %s63
      %p65 = scmp.eq.s32.totalorder %s18, 0
      %p66 = por %p64, %p65
      %s68 = sadd.s32 %s67, 1
      %p71 = scmp.eq.s32.totalorder %s12, 1
      %p72 = scmp.ne.s32.totalorder %s67, %s69
      %p73 = scmp.eq.s32.totalorder %s12, 0
      %p74 = por %p72, %p73
      %p75 = scmp.ne.s32.totalorder %s67, %s69
      %p76 = scmp.eq.s32.totalorder %s17, 1
      %p77 = por %p75, %p76
      %p78 = scmp.ne.s32.totalorder %s69, %s70
      %p79 = scmp.eq.s32.totalorder %s17, 0
      %p80 = por %p78, %p79
      %p81 = scmp.ne.s32.totalorder %s69, %s70
      %p82 = scmp.eq.s32.totalorder %s18, 1
      %p83 = por %p81, %p82
      %p85 = scmp.ne.s32.totalorder %s70, %s84
      %p86 = scmp.eq.s32.totalorder %s18, 0
      %p87 = por %p85, %p86
      %s88 = ssub.s32 %s12, %s19
      %p89 = scmp.eq.s32.totalorder %s88, 0
      %s91 = sadd.s32 %s90, 1
      %s92 = scalar_select %p89, %s90, %s91
      %p95 = pneg %p89
      %p96 = scmp.eq.s32.totalorder %s12, 1
      %p97 = por %p95, %p96
      %p98 = scmp.ne.s32.totalorder %s90, %s93
      %p99 = scmp.eq.s32.totalorder %s12, 0
      %p100 = por %p98, %p99
      %p101 = scmp.ne.s32.totalorder %s90, %s93
      %p102 = scmp.eq.s32.totalorder %s17, 1
      %p103 = por %p101, %p102
      %p104 = scmp.ne.s32.totalorder %s93, %s94
      %p105 = scmp.eq.s32.totalorder %s17, 0
      %p106 = por %p104, %p105
      %p107 = scmp.ne.s32.totalorder %s93, %s94
      %p108 = scmp.eq.s32.totalorder %s18, 1
      %p109 = por %p107, %p108
      %p111 = scmp.ne.s32.totalorder %s94, %s110
      %p112 = scmp.eq.s32.totalorder %s18, 0
      %p113 = por %p111, %p112
      %p114 = scmp.le.s32.totalorder 1, %s12
      %p115 = scmp.lt.s32.totalorder %s12, 3
      %p116 = pnand %p114, %p115
      %p117 = pneg %p116
      // Predicated region
      $region9: #{tpu_custom_call.1} parent=5 // pred_check
        _
      $region10: #{tpu_custom_call.1} parent=5 // pred_check_branch
        %119 = sbr.rel (%p116) target = $region12
      $region11: #{tpu_custom_call.1} parent=5 // pred_region
        %s120 = ssub.s32 %s12, 1
        // Predicated region
        $region13: #{tpu_custom_call.1} parent=11 // pred_check
          %p121 = pneg %p59
        $region14: #{tpu_custom_call.1} parent=11 // pred_check_branch
          %123 = sbr.rel (%p121) target = $region16
        $region15: #{tpu_custom_call.1} parent=11 // pred_region
          _
        $region16: #{tpu_custom_call.1} parent=11 // pred_fallthru
          _
        // Predicated region
        $region17: #{tpu_custom_call.1} parent=11 // pred_check
          %p124 = pneg %p80
        $region18: #{tpu_custom_call.1} parent=11 // pred_check_branch
          %126 = sbr.rel (%p124) target = $region20
        $region19: #{tpu_custom_call.1} parent=11 // pred_region
          _
        $region20: #{tpu_custom_call.1} parent=11 // pred_fallthru
          _
      $region12: #{tpu_custom_call.1} parent=5 // pred_fallthru
        _
      %p127 = scmp.lt.s32.totalorder %s12, 2
      // Predicated region
      $region21: #{tpu_custom_call.1} parent=5 // pred_check
        %p128 = pneg %p127
      $region22: #{tpu_custom_call.1} parent=5 // pred_check_branch
        %130 = sbr.rel (%p128) target = $region24
      $region23: #{tpu_custom_call.1} parent=5 // pred_region
        // Predicated region
        $region25: #{tpu_custom_call.1} parent=23 // pred_check
          %p131 = pneg %p32
        $region26: #{tpu_custom_call.1} parent=23 // pred_check_branch
          %133 = sbr.rel (%p131) target = $region28
        $region27: #{tpu_custom_call.1} parent=23 // pred_region
          %p134 = scmp.lt.s32.totalorder %s12, 1
          %s135 = scalar_select %p134, %s12, 1
          %s136 = smul.addr %s135, 41
          %s137 = smul.addr %s136, 4
          %s138 = scalar_lea.vmem %s0, %s137
        $region28: #{tpu_custom_call.1} parent=23 // pred_fallthru
          _
      $region24: #{tpu_custom_call.1} parent=5 // pred_fallthru
        _
      %p139 = scmp.le.s32.totalorder 1, %s12
      %p140 = scmp.lt.s32.totalorder %s12, 3
      %p141 = pnand %p139, %p140
      %p142 = pneg %p141
      // Predicated region
      $region29: #{tpu_custom_call.1} parent=5 // pred_check
        _
      $region30: #{tpu_custom_call.1} parent=5 // pred_check_branch
        %144 = sbr.rel (%p141) target = $region32
      $region31: #{tpu_custom_call.1} parent=5 // pred_region
        %s145 = ssub.s32 %s12, 1
        %p146 = scmp.lt.s32.totalorder %s17, 1
        %s147 = scalar_select %p146, %s17, 1
        %s148 = smul.addr %s147, 41
        %s149 = smul.addr %s148, 4
        %s150 = scalar_lea.vmem %s0, %s149
        %p151 = pneg %p38
        %p152 = pneg %p35
        %p153 = pneg %p59
        %p154 = pneg %p56
        %p155 = pneg %p80
        %p156 = pneg %p77
        %p157 = pneg %p106
        %p158 = pneg %p103
        %s159 = sand.u32 %s93, 1
        %s160 = scalar_lea.sflag [#allocation3], %s159
        %s161 = sand.u32 %s93, 1
        %s162 = smul.addr %s161, 288
        %s163 = scalar_lea.vmem [#allocation2], %s162
        %p164 = scmp.lt.s32.totalorder %s17, 1
        %s165 = scalar_select %p164, %s17, 1
        %s166 = smul.addr %s165, 41
        %s167 = smul.addr %s166, 4
        %s168 = scalar_lea.vmem %s0, %s167
        %v170 = vld [vmem:[%s168] sm:$0xf]
        %v171 = vld [vmem:[%s168 + $0x4] sm:$0xf]
        %v172 = vld [vmem:[%s168 + $0x8] sm:$0xf]
        %v173 = vld [vmem:[%s168 + $0xc] sm:$0xf]
        %v174 = vld [vmem:[%s168 + $0x10] sm:$0xf]
        %v175 = vld [vmem:[%s168 + $0x14] sm:$0xf]
        %v176 = vld [vmem:[%s168 + $0x18] sm:$0xf]
        %v177 = vld [vmem:[%s168 + $0x1c] sm:$0xf]
        %v178 = vld [vmem:[%s168 + $0x20] sm:$0xf]
        %v179 = vld [vmem:[%s168 + $0x24] sm:$0xf]
        %v180 = vld [vmem:[%s168 + $0x28] sm:$0xf]
        %v181 = vld [vmem:[%s168 + $0x2c] sm:$0xf]
        %v182 = vld [vmem:[%s168 + $0x30] sm:$0xf]
        %v183 = vld [vmem:[%s168 + $0x34] sm:$0xf]
        %v184 = vld [vmem:[%s168 + $0x38] sm:$0xf]
        %v185 = vld [vmem:[%s168 + $0x3c] sm:$0xf]
        %v186 = vld [vmem:[%s168 + $0x40] sm:$0xf]
        %v187 = vld [vmem:[%s168 + $0x44] sm:$0xf]
        %v188 = vld [vmem:[%s168 + $0x48] sm:$0xf]
        %v189 = vld [vmem:[%s168 + $0x4c] sm:$0xf]
        %v190 = vld [vmem:[%s168 + $0x50] sm:$0xf]
        %v191 = vld [vmem:[%s168 + $0x54] sm:$0xf]
        %v192 = vld [vmem:[%s168 + $0x58] sm:$0xf]
        %v193 = vld [vmem:[%s168 + $0x5c] sm:$0xf]
        %v194 = vld [vmem:[%s168 + $0x60] sm:$0xf]
        %v195 = vld [vmem:[%s168 + $0x64] sm:$0xf]
        %v196 = vld [vmem:[%s168 + $0x68] sm:$0xf]
        %v197 = vld [vmem:[%s168 + $0x6c] sm:$0xf]
        %v198 = vld [vmem:[%s168 + $0x70] sm:$0xf]
        %v199 = vld [vmem:[%s168 + $0x74] sm:$0xf]
        %v200 = vld [vmem:[%s168 + $0x78] sm:$0xf]
        %v201 = vld [vmem:[%s168 + $0x7c] sm:$0xf]
        %v202 = vld [vmem:[%s168 + $0x80] sm:$0xf]
        %v203 = vld [vmem:[%s168 + $0x84] sm:$0xf]
        %v204 = vld [vmem:[%s168 + $0x88] sm:$0xf]
        %v205 = vld [vmem:[%s168 + $0x8c] sm:$0xf]
        %v206 = vld [vmem:[%s1] sm:$0x3]
        %v207 = vld [vmem:[%s168 + $0x90] sm:$0x1]
        %s208 = scalar_lea.vmem %s1, 2
        %v209 = vld [vmem:[%s208] sm:$0x3]
        %v247 = vunpack.c.l.b16 %v170
        %v248 = vunpack.c.l.b16 %v171
        %v249 = vunpack.c.l.b16 %v172
        %v250 = vunpack.c.l.b16 %v173
        %v251 = vunpack.c.l.b16 %v174
        %v252 = vunpack.c.l.b16 %v175
        %v253 = vunpack.c.l.b16 %v176
        %v254 = vunpack.c.l.b16 %v177
        %v255 = vunpack.c.l.b16 %v178
        %v256 = vunpack.c.l.b16 %v179
        %v257 = vunpack.c.l.b16 %v180
        %v258 = vunpack.c.l.b16 %v181
        %v259 = vunpack.c.l.b16 %v182
        %v260 = vunpack.c.l.b16 %v183
        %v261 = vunpack.c.l.b16 %v184
        %v262 = vunpack.c.l.b16 %v185
        %v263 = vunpack.c.l.b16 %v186
        %v264 = vunpack.c.l.b16 %v187
        %v265 = vunpack.c.l.b16 %v188
        %v266 = vunpack.c.l.b16 %v189
        %v267 = vunpack.c.l.b16 %v190
        %v268 = vunpack.c.l.b16 %v191
        %v269 = vunpack.c.l.b16 %v192
        %v270 = vunpack.c.l.b16 %v193
        %v271 = vunpack.c.l.b16 %v194
        %v272 = vunpack.c.l.b16 %v195
        %v273 = vunpack.c.l.b16 %v196
        %v274 = vunpack.c.l.b16 %v197
        %v275 = vunpack.c.l.b16 %v198
        %v276 = vunpack.c.l.b16 %v199
        %v277 = vunpack.c.l.b16 %v200
        %v278 = vunpack.c.l.b16 %v201
        %v279 = vunpack.c.l.b16 %v202
        %v280 = vunpack.c.l.b16 %v203
        %v281 = vunpack.c.l.b16 %v204
        %v282 = vunpack.c.l.b16 %v205
        %v283 = vunpack.c.l.b16 %v207
        %v284 = vpack.c.b16 %v248, %v247
        %v285 = vpack.c.b16 %v250, %v249
        %v286 = vpack.c.b16 %v252, %v251
        %v287 = vpack.c.b16 %v254, %v253
        %v288 = vpack.c.b16 %v256, %v255
        %v289 = vpack.c.b16 %v258, %v257
        %v290 = vpack.c.b16 %v260, %v259
        %v291 = vpack.c.b16 %v262, %v261
        %v292 = vpack.c.b16 %v264, %v263
        %v293 = vpack.c.b16 %v266, %v265
        %v294 = vpack.c.b16 %v268, %v267
        %v295 = vpack.c.b16 %v270, %v269
        %v296 = vpack.c.b16 %v272, %v271
        %v297 = vpack.c.b16 %v274, %v273
        %v298 = vpack.c.b16 %v276, %v275
        %v299 = vpack.c.b16 %v278, %v277
        %v300 = vpack.c.b16 %v280, %v279
        %v301 = vpack.c.b16 %v282, %v281
        %v302 = vpack.c.b16 %v283, %v283
        %vm303 = vsmask.f32 7424
        %v305 = vshrl.u32 %v284, 16
        %v307 = vshll.u32 %v284, 16
        %v309 = vrot.slane %v307, 1
        %v310 = vor.u32 %v305, %v309
        %v312 = vshll.u32 %v285, 16
        %v314 = vrot.slane %v312, 1
        %v315 = vsel %vm303, %v310, %v314
        %v316 = vshrl.u32 %v285, 16
        %v318 = vor.u32 %v316, %v314
        %v320 = vshll.u32 %v286, 16
        %v322 = vrot.slane %v320, 1
        %v323 = vsel %vm303, %v318, %v322
        %v324 = vshrl.u32 %v286, 16
        %v326 = vor.u32 %v324, %v322
        %v328 = vshll.u32 %v287, 16
        %v330 = vrot.slane %v328, 1
        %v331 = vsel %vm303, %v326, %v330
        %v332 = vshrl.u32 %v287, 16
        %v334 = vor.u32 %v332, %v330
        %v336 = vshll.u32 %v288, 16
        %v338 = vrot.slane %v336, 1
        %v339 = vsel %vm303, %v334, %v338
        %v340 = vshrl.u32 %v288, 16
        %v342 = vor.u32 %v340, %v338
        %v344 = vshll.u32 %v289, 16
        %v346 = vrot.slane %v344, 1
        %v347 = vsel %vm303, %v342, %v346
        %v348 = vshrl.u32 %v289, 16
        %v350 = vor.u32 %v348, %v346
        %v352 = vshll.u32 %v290, 16
        %v354 = vrot.slane %v352, 1
        %v355 = vsel %vm303, %v350, %v354
        %v356 = vshrl.u32 %v290, 16
        %v358 = vor.u32 %v356, %v354
        %v360 = vshll.u32 %v291, 16
        %v362 = vrot.slane %v360, 1
        %v363 = vsel %vm303, %v358, %v362
        %v364 = vshrl.u32 %v291, 16
        %v366 = vor.u32 %v364, %v362
        %v368 = vshll.u32 %v292, 16
        %v370 = vrot.slane %v368, 1
        %v371 = vsel %vm303, %v366, %v370
        %v372 = vshrl.u32 %v292, 16
        %v374 = vor.u32 %v372, %v370
        %v376 = vshll.u32 %v293, 16
        %v378 = vrot.slane %v376, 1
        %v379 = vsel %vm303, %v374, %v378
        %v380 = vshrl.u32 %v293, 16
        %v382 = vor.u32 %v380, %v378
        %v384 = vshll.u32 %v294, 16
        %v386 = vrot.slane %v384, 1
        %v387 = vsel %vm303, %v382, %v386
        %v388 = vshrl.u32 %v294, 16
        %v390 = vor.u32 %v388, %v386
        %v392 = vshll.u32 %v295, 16
        %v394 = vrot.slane %v392, 1
        %v395 = vsel %vm303, %v390, %v394
        %v396 = vshrl.u32 %v295, 16
        %v398 = vor.u32 %v396, %v394
        %v400 = vshll.u32 %v296, 16
        %v402 = vrot.slane %v400, 1
        %v403 = vsel %vm303, %v398, %v402
        %v404 = vshrl.u32 %v296, 16
        %v406 = vor.u32 %v404, %v402
        %v408 = vshll.u32 %v297, 16
        %v410 = vrot.slane %v408, 1
        %v411 = vsel %vm303, %v406, %v410
        %v412 = vshrl.u32 %v297, 16
        %v414 = vor.u32 %v412, %v410
        %v416 = vshll.u32 %v298, 16
        %v418 = vrot.slane %v416, 1
        %v419 = vsel %vm303, %v414, %v418
        %v420 = vshrl.u32 %v298, 16
        %v422 = vor.u32 %v420, %v418
        %v424 = vshll.u32 %v299, 16
        %v426 = vrot.slane %v424, 1
        %v427 = vsel %vm303, %v422, %v426
        %v428 = vshrl.u32 %v299, 16
        %v430 = vor.u32 %v428, %v426
        %v432 = vshll.u32 %v300, 16
        %v434 = vrot.slane %v432, 1
        %v435 = vsel %vm303, %v430, %v434
        %v436 = vshrl.u32 %v300, 16
        %v438 = vor.u32 %v436, %v434
        %v440 = vshll.u32 %v301, 16
        %v442 = vrot.slane %v440, 1
        %v443 = vsel %vm303, %v438, %v442
        %v444 = vshrl.u32 %v301, 16
        %v446 = vor.u32 %v444, %v442
        %v448 = vshll.u32 %v302, 16
        %v450 = vrot.slane %v448, 1
        %v451 = vsel %vm303, %v446, %v450
        %vm452 = vcmask 31744
        %v454 = vsel %vm452, %v315, 0
        %v457 = vsel %vm452, %v323, 0
        %v460 = vsel %vm452, %v331, 0
        %v463 = vsel %vm452, %v339, 0
        %v466 = vsel %vm452, %v347, 0
        %v469 = vsel %vm452, %v355, 0
        %v472 = vsel %vm452, %v363, 0
        %v475 = vsel %vm452, %v371, 0
        %v478 = vsel %vm452, %v379, 0
        %v481 = vsel %vm452, %v387, 0
        %v484 = vsel %vm452, %v395, 0
        %v487 = vsel %vm452, %v403, 0
        %v490 = vsel %vm452, %v411, 0
        %v493 = vsel %vm452, %v419, 0
        %v496 = vsel %vm452, %v427, 0
        %v499 = vsel %vm452, %v435, 0
        %v502 = vsel %vm452, %v443, 0
        %v505 = vsel %vm452, %v451, 0
        %vm507 = vcmask 1041408
        %v509 = vsel %vm507, %v209, 0
        %511 = vmatpush.bf16.msra.mxu0 0
        %512 = vmatpush.bf16.msra.mxu0 0
        %513 = vmatpush.bf16.msra.mxu0 0
        %514 = vmatpush.bf16.msra.mxu0 0
        %515 = vmatpush.bf16.msra.mxu0 0
        %516 = vmatpush.bf16.msra.mxu0 0
        %517 = vmatpush.bf16.msra.mxu0 0
        %518 = vmatpush.bf16.msra.mxu0 %v509
        %519 = vmatmul.bf16.gmra.mxu0 %v454
        %v520 = vpop.f32.mrf.mxu0
        %v521 = vadd.f32 0.0, %v520
        %v522 = vpop.f32.mrf.mxu0
        %v523 = vadd.f32 0.0, %v522
        %524 = vmatmul.bf16.gmra.mxu0 %v457
        %v525 = vpop.f32.mrf.mxu0
        %v526 = vadd.f32 0.0, %v525
        %v527 = vpop.f32.mrf.mxu0
        %v528 = vadd.f32 0.0, %v527
        %529 = vmatmul.bf16.gmra.mxu0 %v460
        %v530 = vpop.f32.mrf.mxu0
        %v531 = vadd.f32 0.0, %v530
        %v532 = vpop.f32.mrf.mxu0
        %v533 = vadd.f32 0.0, %v532
        %534 = vmatmul.bf16.gmra.mxu0 %v463
        %v535 = vpop.f32.mrf.mxu0
        %v536 = vadd.f32 0.0, %v535
        %v537 = vpop.f32.mrf.mxu0
        %v538 = vadd.f32 0.0, %v537
        %539 = vmatmul.bf16.gmra.mxu0 %v466
        %v540 = vpop.f32.mrf.mxu0
        %v541 = vadd.f32 0.0, %v540
        %v542 = vpop.f32.mrf.mxu0
        %v543 = vadd.f32 0.0, %v542
        %544 = vmatmul.bf16.gmra.mxu0 %v469
        %v545 = vpop.f32.mrf.mxu0
        %v546 = vadd.f32 0.0, %v545
        %v547 = vpop.f32.mrf.mxu0
        %v548 = vadd.f32 0.0, %v547
        %549 = vmatmul.bf16.gmra.mxu0 %v472
        %v550 = vpop.f32.mrf.mxu0
        %v551 = vadd.f32 0.0, %v550
        %v552 = vpop.f32.mrf.mxu0
        %v553 = vadd.f32 0.0, %v552
        %554 = vmatmul.bf16.gmra.mxu0 %v475
        %v555 = vpop.f32.mrf.mxu0
        %v556 = vadd.f32 0.0, %v555
        %v557 = vpop.f32.mrf.mxu0
        %v558 = vadd.f32 0.0, %v557
        %559 = vmatmul.bf16.gmra.mxu0 %v478
        %v560 = vpop.f32.mrf.mxu0
        %v561 = vadd.f32 0.0, %v560
        %v562 = vpop.f32.mrf.mxu0
        %v563 = vadd.f32 0.0, %v562
        %564 = vmatmul.bf16.gmra.mxu0 %v481
        %v565 = vpop.f32.mrf.mxu0
        %v566 = vadd.f32 0.0, %v565
        %v567 = vpop.f32.mrf.mxu0
        %v568 = vadd.f32 0.0, %v567
        %569 = vmatmul.bf16.gmra.mxu0 %v484
        %v570 = vpop.f32.mrf.mxu0
        %v571 = vadd.f32 0.0, %v570
        %v572 = vpop.f32.mrf.mxu0
        %v573 = vadd.f32 0.0, %v572
        %574 = vmatmul.bf16.gmra.mxu0 %v487
        %v575 = vpop.f32.mrf.mxu0
        %v576 = vadd.f32 0.0, %v575
        %v577 = vpop.f32.mrf.mxu0
        %v578 = vadd.f32 0.0, %v577
        %579 = vmatmul.bf16.gmra.mxu0 %v490
        %v580 = vpop.f32.mrf.mxu0
        %v581 = vadd.f32 0.0, %v580
        %v582 = vpop.f32.mrf.mxu0
        %v583 = vadd.f32 0.0, %v582
        %584 = vmatmul.bf16.gmra.mxu0 %v493
        %v585 = vpop.f32.mrf.mxu0
        %v586 = vadd.f32 0.0, %v585
        %v587 = vpop.f32.mrf.mxu0
        %v588 = vadd.f32 0.0, %v587
        %589 = vmatmul.bf16.gmra.mxu0 %v496
        %v590 = vpop.f32.mrf.mxu0
        %v591 = vadd.f32 0.0, %v590
        %v592 = vpop.f32.mrf.mxu0
        %v593 = vadd.f32 0.0, %v592
        %594 = vmatmul.bf16.gmra.mxu0 %v499
        %v595 = vpop.f32.mrf.mxu0
        %v596 = vadd.f32 0.0, %v595
        %v597 = vpop.f32.mrf.mxu0
        %v598 = vadd.f32 0.0, %v597
        %599 = vmatmul.bf16.gmra.mxu0 %v502
        %v600 = vpop.f32.mrf.mxu0
        %v601 = vadd.f32 0.0, %v600
        %v602 = vpop.f32.mrf.mxu0
        %v603 = vadd.f32 0.0, %v602
        %604 = vmatmul.bf16.gmra.mxu0 %v505
        %v605 = vpop.f32.mrf.mxu0
        %v606 = vadd.f32 0.0, %v605
        %v607 = vpop.f32.mrf.mxu0
        %v608 = vadd.f32 0.0, %v607
        %609 = vdwg.mxu0
        %v610 = vsel %vm452, %v284, 0
        %v612 = vsel %vm452, %v285, 0
        %v614 = vsel %vm452, %v286, 0
        %v616 = vsel %vm452, %v287, 0
        %v618 = vsel %vm452, %v288, 0
        %v620 = vsel %vm452, %v289, 0
        %v622 = vsel %vm452, %v290, 0
        %v624 = vsel %vm452, %v291, 0
        %v626 = vsel %vm452, %v292, 0
        %v628 = vsel %vm452, %v293, 0
        %v630 = vsel %vm452, %v294, 0
        %v632 = vsel %vm452, %v295, 0
        %v634 = vsel %vm452, %v296, 0
        %v636 = vsel %vm452, %v297, 0
        %v638 = vsel %vm452, %v298, 0
        %v640 = vsel %vm452, %v299, 0
        %v642 = vsel %vm452, %v300, 0
        %v644 = vsel %vm452, %v301, 0
        %v647 = vsel %vm507, %v206, 0
        %649 = vmatpush.bf16.msra.mxu0 0
        %650 = vmatpush.bf16.msra.mxu0 0
        %651 = vmatpush.bf16.msra.mxu0 0
        %652 = vmatpush.bf16.msra.mxu0 0
        %653 = vmatpush.bf16.msra.mxu0 0
        %654 = vmatpush.bf16.msra.mxu0 0
        %655 = vmatpush.bf16.msra.mxu0 0
        %656 = vmatpush.bf16.msra.mxu0 %v647
        %657 = vmatmul.bf16.gmra.mxu0 %v610
        %v658 = vpop.f32.mrf.mxu0
        %v659 = vadd.f32 %v521, %v658
        %v660 = vpop.f32.mrf.mxu0
        %v661 = vadd.f32 %v523, %v660
        %662 = vmatmul.bf16.gmra.mxu0 %v612
        %v663 = vpop.f32.mrf.mxu0
        %v664 = vadd.f32 %v526, %v663
        %v665 = vpop.f32.mrf.mxu0
        %v666 = vadd.f32 %v528, %v665
        %667 = vmatmul.bf16.gmra.mxu0 %v614
        %v668 = vpop.f32.mrf.mxu0
        %v669 = vadd.f32 %v531, %v668
        %v670 = vpop.f32.mrf.mxu0
        %v671 = vadd.f32 %v533, %v670
        %672 = vmatmul.bf16.gmra.mxu0 %v616
        %v673 = vpop.f32.mrf.mxu0
        %v674 = vadd.f32 %v536, %v673
        %v675 = vpop.f32.mrf.mxu0
        %v676 = vadd.f32 %v538, %v675
        %677 = vmatmul.bf16.gmra.mxu0 %v618
        %v678 = vpop.f32.mrf.mxu0
        %v679 = vadd.f32 %v541, %v678
        %v680 = vpop.f32.mrf.mxu0
        %v681 = vadd.f32 %v543, %v680
        %682 = vmatmul.bf16.gmra.mxu0 %v620
        %v683 = vpop.f32.mrf.mxu0
        %v684 = vadd.f32 %v546, %v683
        %v685 = vpop.f32.mrf.mxu0
        %v686 = vadd.f32 %v548, %v685
        %687 = vmatmul.bf16.gmra.mxu0 %v622
        %v688 = vpop.f32.mrf.mxu0
        %v689 = vadd.f32 %v551, %v688
        %v690 = vpop.f32.mrf.mxu0
        %v691 = vadd.f32 %v553, %v690
        %692 = vmatmul.bf16.gmra.mxu0 %v624
        %v693 = vpop.f32.mrf.mxu0
        %v694 = vadd.f32 %v556, %v693
        %v695 = vpop.f32.mrf.mxu0
        %v696 = vadd.f32 %v558, %v695
        %697 = vmatmul.bf16.gmra.mxu0 %v626
        %v698 = vpop.f32.mrf.mxu0
        %v699 = vadd.f32 %v561, %v698
        %v700 = vpop.f32.mrf.mxu0
        %v701 = vadd.f32 %v563, %v700
        %702 = vmatmul.bf16.gmra.mxu0 %v628
        %v703 = vpop.f32.mrf.mxu0
        %v704 = vadd.f32 %v566, %v703
        %v705 = vpop.f32.mrf.mxu0
        %v706 = vadd.f32 %v568, %v705
        %707 = vmatmul.bf16.gmra.mxu0 %v630
        %v708 = vpop.f32.mrf.mxu0
        %v709 = vadd.f32 %v571, %v708
        %v710 = vpop.f32.mrf.mxu0
        %v711 = vadd.f32 %v573, %v710
        %712 = vmatmul.bf16.gmra.mxu0 %v632
        %v713 = vpop.f32.mrf.mxu0
        %v714 = vadd.f32 %v576, %v713
        %v715 = vpop.f32.mrf.mxu0
        %v716 = vadd.f32 %v578, %v715
        %717 = vmatmul.bf16.gmra.mxu0 %v634
        %v718 = vpop.f32.mrf.mxu0
        %v719 = vadd.f32 %v581, %v718
        %v720 = vpop.f32.mrf.mxu0
        %v721 = vadd.f32 %v583, %v720
        %722 = vmatmul.bf16.gmra.mxu0 %v636
        %v723 = vpop.f32.mrf.mxu0
        %v724 = vadd.f32 %v586, %v723
        %v725 = vpop.f32.mrf.mxu0
        %v726 = vadd.f32 %v588, %v725
        %727 = vmatmul.bf16.gmra.mxu0 %v638
        %v728 = vpop.f32.mrf.mxu0
        %v729 = vadd.f32 %v591, %v728
        %v730 = vpop.f32.mrf.mxu0
        %v731 = vadd.f32 %v593, %v730
        %732 = vmatmul.bf16.gmra.mxu0 %v640
        %v733 = vpop.f32.mrf.mxu0
        %v734 = vadd.f32 %v596, %v733
        %v735 = vpop.f32.mrf.mxu0
        %v736 = vadd.f32 %v598, %v735
        %737 = vmatmul.bf16.gmra.mxu0 %v642
        %v738 = vpop.f32.mrf.mxu0
        %v739 = vadd.f32 %v601, %v738
        %v740 = vpop.f32.mrf.mxu0
        %v741 = vadd.f32 %v603, %v740
        %742 = vmatmul.bf16.gmra.mxu0 %v644
        %v743 = vpop.f32.mrf.mxu0
        %v744 = vadd.f32 %v606, %v743
        %v745 = vpop.f32.mrf.mxu0
        %v746 = vadd.f32 %v608, %v745
        %747 = vdwg.mxu0
        %v748 = vld [vmem:[%s168] sm:$0xe]
        %s749 = scalar_lea.vmem %s1, 4
        %v750 = vld [vmem:[%s749] sm:$0x3]
        %v752 = vunpack.c.l.b16 %v748
        %v753 = vpack.c.b16 %v248, %v752
        %vm754 = vcmask 1046528
        %v755 = vrot.slane %v753, 1
        %v756 = vrot.slane %v285, 1
        %v757 = vsel %vm754, %v755, %v756
        %v758 = vrot.slane %v286, 1
        %v759 = vsel %vm754, %v756, %v758
        %v760 = vrot.slane %v287, 1
        %v761 = vsel %vm754, %v758, %v760
        %v762 = vrot.slane %v288, 1
        %v763 = vsel %vm754, %v760, %v762
        %v764 = vrot.slane %v289, 1
        %v765 = vsel %vm754, %v762, %v764
        %v766 = vrot.slane %v290, 1
        %v767 = vsel %vm754, %v764, %v766
        %v768 = vrot.slane %v291, 1
        %v769 = vsel %vm754, %v766, %v768
        %v770 = vrot.slane %v292, 1
        %v771 = vsel %vm754, %v768, %v770
        %v772 = vrot.slane %v293, 1
        %v773 = vsel %vm754, %v770, %v772
        %v774 = vrot.slane %v294, 1
        %v775 = vsel %vm754, %v772, %v774
        %v776 = vrot.slane %v295, 1
        %v777 = vsel %vm754, %v774, %v776
        %v778 = vrot.slane %v296, 1
        %v779 = vsel %vm754, %v776, %v778
        %v780 = vrot.slane %v297, 1
        %v781 = vsel %vm754, %v778, %v780
        %v782 = vrot.slane %v298, 1
        %v783 = vsel %vm754, %v780, %v782
        %v784 = vrot.slane %v299, 1
        %v785 = vsel %vm754, %v782, %v784
        %v786 = vrot.slane %v300, 1
        %v787 = vsel %vm754, %v784, %v786
        %v788 = vrot.slane %v301, 1
        %v789 = vsel %vm754, %v786, %v788
        %v790 = vrot.slane %v302, 1
        %v791 = vsel %vm754, %v788, %v790
        %v793 = vsel %vm452, %v757, 0
        %v796 = vsel %vm452, %v759, 0
        %v799 = vsel %vm452, %v761, 0
        %v802 = vsel %vm452, %v763, 0
        %v805 = vsel %vm452, %v765, 0
        %v808 = vsel %vm452, %v767, 0
        %v811 = vsel %vm452, %v769, 0
        %v814 = vsel %vm452, %v771, 0
        %v817 = vsel %vm452, %v773, 0
        %v820 = vsel %vm452, %v775, 0
        %v823 = vsel %vm452, %v777, 0
        %v826 = vsel %vm452, %v779, 0
        %v829 = vsel %vm452, %v781, 0
        %v832 = vsel %vm452, %v783, 0
        %v835 = vsel %vm452, %v785, 0
        %v838 = vsel %vm452, %v787, 0
        %v841 = vsel %vm452, %v789, 0
        %v844 = vsel %vm452, %v791, 0
        %v847 = vsel %vm507, %v750, 0
        %849 = vmatpush.bf16.msra.mxu0 0
        %850 = vmatpush.bf16.msra.mxu0 0
        %851 = vmatpush.bf16.msra.mxu0 0
        %852 = vmatpush.bf16.msra.mxu0 0
        %853 = vmatpush.bf16.msra.mxu0 0
        %854 = vmatpush.bf16.msra.mxu0 0
        %855 = vmatpush.bf16.msra.mxu0 0
        %856 = vmatpush.bf16.msra.mxu0 %v847
        %857 = vmatmul.bf16.gmra.mxu0 %v793
        %v858 = vpop.f32.mrf.mxu0
        %v859 = vadd.f32 0.0, %v858
        %v860 = vpop.f32.mrf.mxu0
        %v861 = vadd.f32 0.0, %v860
        %862 = vmatmul.bf16.gmra.mxu0 %v796
        %v863 = vpop.f32.mrf.mxu0
        %v864 = vadd.f32 0.0, %v863
        %v865 = vpop.f32.mrf.mxu0
        %v866 = vadd.f32 0.0, %v865
        %867 = vmatmul.bf16.gmra.mxu0 %v799
        %v868 = vpop.f32.mrf.mxu0
        %v869 = vadd.f32 0.0, %v868
        %v870 = vpop.f32.mrf.mxu0
        %v871 = vadd.f32 0.0, %v870
        %872 = vmatmul.bf16.gmra.mxu0 %v802
        %v873 = vpop.f32.mrf.mxu0
        %v874 = vadd.f32 0.0, %v873
        %v875 = vpop.f32.mrf.mxu0
        %v876 = vadd.f32 0.0, %v875
        %877 = vmatmul.bf16.gmra.mxu0 %v805
        %v878 = vpop.f32.mrf.mxu0
        %v879 = vadd.f32 0.0, %v878
        %v880 = vpop.f32.mrf.mxu0
        %v881 = vadd.f32 0.0, %v880
        %882 = vmatmul.bf16.gmra.mxu0 %v808
        %v883 = vpop.f32.mrf.mxu0
        %v884 = vadd.f32 0.0, %v883
        %v885 = vpop.f32.mrf.mxu0
        %v886 = vadd.f32 0.0, %v885
        %887 = vmatmul.bf16.gmra.mxu0 %v811
        %v888 = vpop.f32.mrf.mxu0
        %v889 = vadd.f32 0.0, %v888
        %v890 = vpop.f32.mrf.mxu0
        %v891 = vadd.f32 0.0, %v890
        %892 = vmatmul.bf16.gmra.mxu0 %v814
        %v893 = vpop.f32.mrf.mxu0
        %v894 = vadd.f32 0.0, %v893
        %v895 = vpop.f32.mrf.mxu0
        %v896 = vadd.f32 0.0, %v895
        %897 = vmatmul.bf16.gmra.mxu0 %v817
        %v898 = vpop.f32.mrf.mxu0
        %v899 = vadd.f32 0.0, %v898
        %v900 = vpop.f32.mrf.mxu0
        %v901 = vadd.f32 0.0, %v900
        %902 = vmatmul.bf16.gmra.mxu0 %v820
        %v903 = vpop.f32.mrf.mxu0
        %v904 = vadd.f32 0.0, %v903
        %v905 = vpop.f32.mrf.mxu0
        %v906 = vadd.f32 0.0, %v905
        %907 = vmatmul.bf16.gmra.mxu0 %v823
        %v908 = vpop.f32.mrf.mxu0
        %v909 = vadd.f32 0.0, %v908
        %v910 = vpop.f32.mrf.mxu0
        %v911 = vadd.f32 0.0, %v910
        %912 = vmatmul.bf16.gmra.mxu0 %v826
        %v913 = vpop.f32.mrf.mxu0
        %v914 = vadd.f32 0.0, %v913
        %v915 = vpop.f32.mrf.mxu0
        %v916 = vadd.f32 0.0, %v915
        %917 = vmatmul.bf16.gmra.mxu0 %v829
        %v918 = vpop.f32.mrf.mxu0
        %v919 = vadd.f32 0.0, %v918
        %v920 = vpop.f32.mrf.mxu0
        %v921 = vadd.f32 0.0, %v920
        %922 = vmatmul.bf16.gmra.mxu0 %v832
        %v923 = vpop.f32.mrf.mxu0
        %v924 = vadd.f32 0.0, %v923
        %v925 = vpop.f32.mrf.mxu0
        %v926 = vadd.f32 0.0, %v925
        %927 = vmatmul.bf16.gmra.mxu0 %v835
        %v928 = vpop.f32.mrf.mxu0
        %v929 = vadd.f32 0.0, %v928
        %v930 = vpop.f32.mrf.mxu0
        %v931 = vadd.f32 0.0, %v930
        %932 = vmatmul.bf16.gmra.mxu0 %v838
        %v933 = vpop.f32.mrf.mxu0
        %v934 = vadd.f32 0.0, %v933
        %v935 = vpop.f32.mrf.mxu0
        %v936 = vadd.f32 0.0, %v935
        %937 = vmatmul.bf16.gmra.mxu0 %v841
        %v938 = vpop.f32.mrf.mxu0
        %v939 = vadd.f32 0.0, %v938
        %v940 = vpop.f32.mrf.mxu0
        %v941 = vadd.f32 0.0, %v940
        %942 = vmatmul.bf16.gmra.mxu0 %v844
        %v943 = vpop.f32.mrf.mxu0
        %v944 = vadd.f32 0.0, %v943
        %v945 = vpop.f32.mrf.mxu0
        %v946 = vadd.f32 0.0, %v945
        %947 = vdwg.mxu0
        %v948 = vadd.f32 %v659, %v859
        %v949 = vadd.f32 %v661, %v861
        %v950 = vadd.f32 %v664, %v864
        %v951 = vadd.f32 %v666, %v866
        %v952 = vadd.f32 %v669, %v869
        %v953 = vadd.f32 %v671, %v871
        %v954 = vadd.f32 %v674, %v874
        %v955 = vadd.f32 %v676, %v876
        %v956 = vadd.f32 %v679, %v879
        %v957 = vadd.f32 %v681, %v881
        %v958 = vadd.f32 %v684, %v884
        %v959 = vadd.f32 %v686, %v886
        %v960 = vadd.f32 %v689, %v889
        %v961 = vadd.f32 %v691, %v891
        %v962 = vadd.f32 %v694, %v894
        %v963 = vadd.f32 %v696, %v896
        %v964 = vadd.f32 %v699, %v899
        %v965 = vadd.f32 %v701, %v901
        %v966 = vadd.f32 %v704, %v904
        %v967 = vadd.f32 %v706, %v906
        %v968 = vadd.f32 %v709, %v909
        %v969 = vadd.f32 %v711, %v911
        %v970 = vadd.f32 %v714, %v914
        %v971 = vadd.f32 %v716, %v916
        %v972 = vadd.f32 %v719, %v919
        %v973 = vadd.f32 %v721, %v921
        %v974 = vadd.f32 %v724, %v924
        %v975 = vadd.f32 %v726, %v926
        %v976 = vadd.f32 %v729, %v929
        %v977 = vadd.f32 %v731, %v931
        %v978 = vadd.f32 %v734, %v934
        %v979 = vadd.f32 %v736, %v936
        %v980 = vadd.f32 %v739, %v939
        %v981 = vadd.f32 %v741, %v941
        %v982 = vadd.f32 %v744, %v944
        %v983 = vadd.f32 %v746, %v946
        %v984 = vld [vmem:[%s168 + $0x8] sm:$0xe]
        %v985 = vld [vmem:[%s168 + $0xc] sm:$0xf]
        %v986 = vld [vmem:[%s168 + $0x10] sm:$0xf]
        %v987 = vld [vmem:[%s168 + $0x14] sm:$0xf]
        %v988 = vld [vmem:[%s168 + $0x18] sm:$0xf]
        %v989 = vld [vmem:[%s168 + $0x1c] sm:$0xf]
        %v990 = vld [vmem:[%s168 + $0x20] sm:$0xf]
        %v991 = vld [vmem:[%s168 + $0x24] sm:$0xf]
        %v992 = vld [vmem:[%s168 + $0x28] sm:$0xf]
        %v993 = vld [vmem:[%s168 + $0x2c] sm:$0xf]
        %v994 = vld [vmem:[%s168 + $0x30] sm:$0xf]
        %v995 = vld [vmem:[%s168 + $0x34] sm:$0xf]
        %v996 = vld [vmem:[%s168 + $0x38] sm:$0xf]
        %v997 = vld [vmem:[%s168 + $0x3c] sm:$0xf]
        %v998 = vld [vmem:[%s168 + $0x40] sm:$0xf]
        %v999 = vld [vmem:[%s168 + $0x44] sm:$0xf]
        %v1000 = vld [vmem:[%s168 + $0x48] sm:$0xf]
        %v1001 = vld [vmem:[%s168 + $0x4c] sm:$0xf]
        %v1002 = vld [vmem:[%s168 + $0x50] sm:$0xf]
        %v1003 = vld [vmem:[%s168 + $0x54] sm:$0xf]
        %v1004 = vld [vmem:[%s168 + $0x58] sm:$0xf]
        %v1005 = vld [vmem:[%s168 + $0x5c] sm:$0xf]
        %v1006 = vld [vmem:[%s168 + $0x60] sm:$0xf]
        %v1007 = vld [vmem:[%s168 + $0x64] sm:$0xf]
        %v1008 = vld [vmem:[%s168 + $0x68] sm:$0xf]
        %v1009 = vld [vmem:[%s168 + $0x6c] sm:$0xf]
        %v1010 = vld [vmem:[%s168 + $0x70] sm:$0xf]
        %v1011 = vld [vmem:[%s168 + $0x74] sm:$0xf]
        %v1012 = vld [vmem:[%s168 + $0x78] sm:$0xf]
        %v1013 = vld [vmem:[%s168 + $0x7c] sm:$0xf]
        %v1014 = vld [vmem:[%s168 + $0x80] sm:$0xf]
        %v1015 = vld [vmem:[%s168 + $0x84] sm:$0xf]
        %v1016 = vld [vmem:[%s168 + $0x88] sm:$0xf]
        %v1017 = vld [vmem:[%s168 + $0x8c] sm:$0xf]
        %v1018 = vld [vmem:[%s168 + $0x90] sm:$0xf]
        %v1019 = vld [vmem:[%s168 + $0x94] sm:$0xf]
        %v1020 = vld [vmem:[%s168 + $0x98] sm:$0x1]
        %s1021 = scalar_lea.vmem %s1, 6
        %v1022 = vld [vmem:[%s1021] sm:$0x3]
        %v1060 = vunpack.c.l.b16 %v984
        %v1061 = vunpack.c.l.b16 %v985
        %v1062 = vunpack.c.l.b16 %v986
        %v1063 = vunpack.c.l.b16 %v987
        %v1064 = vunpack.c.l.b16 %v988
        %v1065 = vunpack.c.l.b16 %v989
        %v1066 = vunpack.c.l.b16 %v990
        %v1067 = vunpack.c.l.b16 %v991
        %v1068 = vunpack.c.l.b16 %v992
        %v1069 = vunpack.c.l.b16 %v993
        %v1070 = vunpack.c.l.b16 %v994
        %v1071 = vunpack.c.l.b16 %v995
        %v1072 = vunpack.c.l.b16 %v996
        %v1073 = vunpack.c.l.b16 %v997
        %v1074 = vunpack.c.l.b16 %v998
        %v1075 = vunpack.c.l.b16 %v999
        %v1076 = vunpack.c.l.b16 %v1000
        %v1077 = vunpack.c.l.b16 %v1001
        %v1078 = vunpack.c.l.b16 %v1002
        %v1079 = vunpack.c.l.b16 %v1003
        %v1080 = vunpack.c.l.b16 %v1004
        %v1081 = vunpack.c.l.b16 %v1005
        %v1082 = vunpack.c.l.b16 %v1006
        %v1083 = vunpack.c.l.b16 %v1007
        %v1084 = vunpack.c.l.b16 %v1008
        %v1085 = vunpack.c.l.b16 %v1009
        %v1086 = vunpack.c.l.b16 %v1010
        %v1087 = vunpack.c.l.b16 %v1011
        %v1088 = vunpack.c.l.b16 %v1012
        %v1089 = vunpack.c.l.b16 %v1013
        %v1090 = vunpack.c.l.b16 %v1014
        %v1091 = vunpack.c.l.b16 %v1015
        %v1092 = vunpack.c.l.b16 %v1016
        %v1093 = vunpack.c.l.b16 %v1017
        %v1094 = vunpack.c.l.b16 %v1018
        %v1095 = vunpack.c.l.b16 %v1019
        %v1096 = vunpack.c.l.b16 %v1020
        %v1097 = vpack.c.b16 %v1061, %v1060
        %v1098 = vpack.c.b16 %v1063, %v1062
        %v1099 = vpack.c.b16 %v1065, %v1064
        %v1100 = vpack.c.b16 %v1067, %v1066
        %v1101 = vpack.c.b16 %v1069, %v1068
        %v1102 = vpack.c.b16 %v1071, %v1070
        %v1103 = vpack.c.b16 %v1073, %v1072
        %v1104 = vpack.c.b16 %v1075, %v1074
        %v1105 = vpack.c.b16 %v1077, %v1076
        %v1106 = vpack.c.b16 %v1079, %v1078
        %v1107 = vpack.c.b16 %v1081, %v1080
        %v1108 = vpack.c.b16 %v1083, %v1082
        %v1109 = vpack.c.b16 %v1085, %v1084
        %v1110 = vpack.c.b16 %v1087, %v1086
        %v1111 = vpack.c.b16 %v1089, %v1088
        %v1112 = vpack.c.b16 %v1091, %v1090
        %v1113 = vpack.c.b16 %v1093, %v1092
        %v1114 = vpack.c.b16 %v1095, %v1094
        %v1115 = vpack.c.b16 %v1096, %v1096
        %v1116 = vrot.slane %v1097, 1
        %v1117 = vrot.slane %v1098, 1
        %v1118 = vsel %vm754, %v1116, %v1117
        %v1119 = vrot.slane %v1099, 1
        %v1120 = vsel %vm754, %v1117, %v1119
        %v1121 = vrot.slane %v1100, 1
        %v1122 = vsel %vm754, %v1119, %v1121
        %v1123 = vrot.slane %v1101, 1
        %v1124 = vsel %vm754, %v1121, %v1123
        %v1125 = vrot.slane %v1102, 1
        %v1126 = vsel %vm754, %v1123, %v1125
        %v1127 = vrot.slane %v1103, 1
        %v1128 = vsel %vm754, %v1125, %v1127
        %v1129 = vrot.slane %v1104, 1
        %v1130 = vsel %vm754, %v1127, %v1129
        %v1131 = vrot.slane %v1105, 1
        %v1132 = vsel %vm754, %v1129, %v1131
        %v1133 = vrot.slane %v1106, 1
        %v1134 = vsel %vm754, %v1131, %v1133
        %v1135 = vrot.slane %v1107, 1
        %v1136 = vsel %vm754, %v1133, %v1135
        %v1137 = vrot.slane %v1108, 1
        %v1138 = vsel %vm754, %v1135, %v1137
        %v1139 = vrot.slane %v1109, 1
        %v1140 = vsel %vm754, %v1137, %v1139
        %v1141 = vrot.slane %v1110, 1
        %v1142 = vsel %vm754, %v1139, %v1141
        %v1143 = vrot.slane %v1111, 1
        %v1144 = vsel %vm754, %v1141, %v1143
        %v1145 = vrot.slane %v1112, 1
        %v1146 = vsel %vm754, %v1143, %v1145
        %v1147 = vrot.slane %v1113, 1
        %v1148 = vsel %vm754, %v1145, %v1147
        %v1149 = vrot.slane %v1114, 1
        %v1150 = vsel %vm754, %v1147, %v1149
        %v1151 = vrot.slane %v1115, 1
        %v1152 = vsel %vm754, %v1149, %v1151
        %v1154 = vsel %vm452, %v1118, 0
        %v1157 = vsel %vm452, %v1120, 0
        %v1160 = vsel %vm452, %v1122, 0
        %v1163 = vsel %vm452, %v1124, 0
        %v1166 = vsel %vm452, %v1126, 0
        %v1169 = vsel %vm452, %v1128, 0
        %v1172 = vsel %vm452, %v1130, 0
        %v1175 = vsel %vm452, %v1132, 0
        %v1178 = vsel %vm452, %v1134, 0
        %v1181 = vsel %vm452, %v1136, 0
        %v1184 = vsel %vm452, %v1138, 0
        %v1187 = vsel %vm452, %v1140, 0
        %v1190 = vsel %vm452, %v1142, 0
        %v1193 = vsel %vm452, %v1144, 0
        %v1196 = vsel %vm452, %v1146, 0
        %v1199 = vsel %vm452, %v1148, 0
        %v1202 = vsel %vm452, %v1150, 0
        %v1205 = vsel %vm452, %v1152, 0
        %v1208 = vsel %vm507, %v1022, 0
        %1210 = vmatpush.bf16.msra.mxu0 0
        %1211 = vmatpush.bf16.msra.mxu0 0
        %1212 = vmatpush.bf16.msra.mxu0 0
        %1213 = vmatpush.bf16.msra.mxu0 0
        %1214 = vmatpush.bf16.msra.mxu0 0
        %1215 = vmatpush.bf16.msra.mxu0 0
        %1216 = vmatpush.bf16.msra.mxu0 0
        %1217 = vmatpush.bf16.msra.mxu0 %v1208
        %1218 = vmatmul.bf16.gmra.mxu0 %v1154
        %v1219 = vpop.f32.mrf.mxu0
        %v1220 = vadd.f32 0.0, %v1219
        %v1221 = vpop.f32.mrf.mxu0
        %v1222 = vadd.f32 0.0, %v1221
        %1223 = vmatmul.bf16.gmra.mxu0 %v1157
        %v1224 = vpop.f32.mrf.mxu0
        %v1225 = vadd.f32 0.0, %v1224
        %v1226 = vpop.f32.mrf.mxu0
        %v1227 = vadd.f32 0.0, %v1226
        %1228 = vmatmul.bf16.gmra.mxu0 %v1160
        %v1229 = vpop.f32.mrf.mxu0
        %v1230 = vadd.f32 0.0, %v1229
        %v1231 = vpop.f32.mrf.mxu0
        %v1232 = vadd.f32 0.0, %v1231
        %1233 = vmatmul.bf16.gmra.mxu0 %v1163
        %v1234 = vpop.f32.mrf.mxu0
        %v1235 = vadd.f32 0.0, %v1234
        %v1236 = vpop.f32.mrf.mxu0
        %v1237 = vadd.f32 0.0, %v1236
        %1238 = vmatmul.bf16.gmra.mxu0 %v1166
        %v1239 = vpop.f32.mrf.mxu0
        %v1240 = vadd.f32 0.0, %v1239
        %v1241 = vpop.f32.mrf.mxu0
        %v1242 = vadd.f32 0.0, %v1241
        %1243 = vmatmul.bf16.gmra.mxu0 %v1169
        %v1244 = vpop.f32.mrf.mxu0
        %v1245 = vadd.f32 0.0, %v1244
        %v1246 = vpop.f32.mrf.mxu0
        %v1247 = vadd.f32 0.0, %v1246
        %1248 = vmatmul.bf16.gmra.mxu0 %v1172
        %v1249 = vpop.f32.mrf.mxu0
        %v1250 = vadd.f32 0.0, %v1249
        %v1251 = vpop.f32.mrf.mxu0
        %v1252 = vadd.f32 0.0, %v1251
        %1253 = vmatmul.bf16.gmra.mxu0 %v1175
        %v1254 = vpop.f32.mrf.mxu0
        %v1255 = vadd.f32 0.0, %v1254
        %v1256 = vpop.f32.mrf.mxu0
        %v1257 = vadd.f32 0.0, %v1256
        %1258 = vmatmul.bf16.gmra.mxu0 %v1178
        %v1259 = vpop.f32.mrf.mxu0
        %v1260 = vadd.f32 0.0, %v1259
        %v1261 = vpop.f32.mrf.mxu0
        %v1262 = vadd.f32 0.0, %v1261
        %1263 = vmatmul.bf16.gmra.mxu0 %v1181
        %v1264 = vpop.f32.mrf.mxu0
        %v1265 = vadd.f32 0.0, %v1264
        %v1266 = vpop.f32.mrf.mxu0
        %v1267 = vadd.f32 0.0, %v1266
        %1268 = vmatmul.bf16.gmra.mxu0 %v1184
        %v1269 = vpop.f32.mrf.mxu0
        %v1270 = vadd.f32 0.0, %v1269
        %v1271 = vpop.f32.mrf.mxu0
        %v1272 = vadd.f32 0.0, %v1271
        %1273 = vmatmul.bf16.gmra.mxu0 %v1187
        %v1274 = vpop.f32.mrf.mxu0
        %v1275 = vadd.f32 0.0, %v1274
        %v1276 = vpop.f32.mrf.mxu0
        %v1277 = vadd.f32 0.0, %v1276
        %1278 = vmatmul.bf16.gmra.mxu0 %v1190
        %v1279 = vpop.f32.mrf.mxu0
        %v1280 = vadd.f32 0.0, %v1279
        %v1281 = vpop.f32.mrf.mxu0
        %v1282 = vadd.f32 0.0, %v1281
        %1283 = vmatmul.bf16.gmra.mxu0 %v1193
        %v1284 = vpop.f32.mrf.mxu0
        %v1285 = vadd.f32 0.0, %v1284
        %v1286 = vpop.f32.mrf.mxu0
        %v1287 = vadd.f32 0.0, %v1286
        %1288 = vmatmul.bf16.gmra.mxu0 %v1196
        %v1289 = vpop.f32.mrf.mxu0
        %v1290 = vadd.f32 0.0, %v1289
        %v1291 = vpop.f32.mrf.mxu0
        %v1292 = vadd.f32 0.0, %v1291
        %1293 = vmatmul.bf16.gmra.mxu0 %v1199
        %v1294 = vpop.f32.mrf.mxu0
        %v1295 = vadd.f32 0.0, %v1294
        %v1296 = vpop.f32.mrf.mxu0
        %v1297 = vadd.f32 0.0, %v1296
        %1298 = vmatmul.bf16.gmra.mxu0 %v1202
        %v1299 = vpop.f32.mrf.mxu0
        %v1300 = vadd.f32 0.0, %v1299
        %v1301 = vpop.f32.mrf.mxu0
        %v1302 = vadd.f32 0.0, %v1301
        %1303 = vmatmul.bf16.gmra.mxu0 %v1205
        %v1304 = vpop.f32.mrf.mxu0
        %v1305 = vadd.f32 0.0, %v1304
        %v1306 = vpop.f32.mrf.mxu0
        %v1307 = vadd.f32 0.0, %v1306
        %1308 = vdwg.mxu0
        %v1309 = vadd.f32 %v948, %v1220
        %v1310 = vadd.f32 %v949, %v1222
        %v1311 = vadd.f32 %v950, %v1225
        %v1312 = vadd.f32 %v951, %v1227
        %v1313 = vadd.f32 %v952, %v1230
        %v1314 = vadd.f32 %v953, %v1232
        %v1315 = vadd.f32 %v954, %v1235
        %v1316 = vadd.f32 %v955, %v1237
        %v1317 = vadd.f32 %v956, %v1240
        %v1318 = vadd.f32 %v957, %v1242
        %v1319 = vadd.f32 %v958, %v1245
        %v1320 = vadd.f32 %v959, %v1247
        %v1321 = vadd.f32 %v960, %v1250
        %v1322 = vadd.f32 %v961, %v1252
        %v1323 = vadd.f32 %v962, %v1255
        %v1324 = vadd.f32 %v963, %v1257
        %v1325 = vadd.f32 %v964, %v1260
        %v1326 = vadd.f32 %v965, %v1262
        %v1327 = vadd.f32 %v966, %v1265
        %v1328 = vadd.f32 %v967, %v1267
        %v1329 = vadd.f32 %v968, %v1270
        %v1330 = vadd.f32 %v969, %v1272
        %v1331 = vadd.f32 %v970, %v1275
        %v1332 = vadd.f32 %v971, %v1277
        %v1333 = vadd.f32 %v972, %v1280
        %v1334 = vadd.f32 %v973, %v1282
        %v1335 = vadd.f32 %v974, %v1285
        %v1336 = vadd.f32 %v975, %v1287
        %v1337 = vadd.f32 %v976, %v1290
        %v1338 = vadd.f32 %v977, %v1292
        %v1339 = vadd.f32 %v978, %v1295
        %v1340 = vadd.f32 %v979, %v1297
        %v1341 = vadd.f32 %v980, %v1300
        %v1342 = vadd.f32 %v981, %v1302
        %v1343 = vadd.f32 %v982, %v1305
        %v1344 = vadd.f32 %v983, %v1307
        %v1345 = vld [vmem:[%s168 + $0x98] sm:$0x3]
        %s1346 = scalar_lea.vmem %s1, 8
        %v1347 = vld [vmem:[%s1346] sm:$0x3]
        %v1349 = vunpack.c.l.b16 %v1345
        %v1350 = vpack.c.b16 %v1349, %v1349
        %vm1351 = vsmask.f32 6400
        %v1353 = vshrl.u32 %v1097, 16
        %v1355 = vrot.slane %v1353, 1
        %v1356 = vshll.u32 %v1097, 16
        %v1358 = vrot.slane %v1356, 2
        %v1359 = vor.u32 %v1355, %v1358
        %v1361 = vshrl.u32 %v1098, 16
        %v1363 = vrot.slane %v1361, 1
        %v1364 = vshll.u32 %v1098, 16
        %v1366 = vrot.slane %v1364, 2
        %v1367 = vor.u32 %v1363, %v1366
        %v1368 = vsel %vm1351, %v1359, %v1367
        %v1370 = vshrl.u32 %v1099, 16
        %v1372 = vrot.slane %v1370, 1
        %v1373 = vshll.u32 %v1099, 16
        %v1375 = vrot.slane %v1373, 2
        %v1376 = vor.u32 %v1372, %v1375
        %v1377 = vsel %vm1351, %v1367, %v1376
        %v1379 = vshrl.u32 %v1100, 16
        %v1381 = vrot.slane %v1379, 1
        %v1382 = vshll.u32 %v1100, 16
        %v1384 = vrot.slane %v1382, 2
        %v1385 = vor.u32 %v1381, %v1384
        %v1386 = vsel %vm1351, %v1376, %v1385
        %v1388 = vshrl.u32 %v1101, 16
        %v1390 = vrot.slane %v1388, 1
        %v1391 = vshll.u32 %v1101, 16
        %v1393 = vrot.slane %v1391, 2
        %v1394 = vor.u32 %v1390, %v1393
        %v1395 = vsel %vm1351, %v1385, %v1394
        %v1397 = vshrl.u32 %v1102, 16
        %v1399 = vrot.slane %v1397, 1
        %v1400 = vshll.u32 %v1102, 16
        %v1402 = vrot.slane %v1400, 2
        %v1403 = vor.u32 %v1399, %v1402
        %v1404 = vsel %vm1351, %v1394, %v1403
        %v1406 = vshrl.u32 %v1103, 16
        %v1408 = vrot.slane %v1406, 1
        %v1409 = vshll.u32 %v1103, 16
        %v1411 = vrot.slane %v1409, 2
        %v1412 = vor.u32 %v1408, %v1411
        %v1413 = vsel %vm1351, %v1403, %v1412
        %v1415 = vshrl.u32 %v1104, 16
        %v1417 = vrot.slane %v1415, 1
        %v1418 = vshll.u32 %v1104, 16
        %v1420 = vrot.slane %v1418, 2
        %v1421 = vor.u32 %v1417, %v1420
        %v1422 = vsel %vm1351, %v1412, %v1421
        %v1424 = vshrl.u32 %v1105, 16
        %v1426 = vrot.slane %v1424, 1
        %v1427 = vshll.u32 %v1105, 16
        %v1429 = vrot.slane %v1427, 2
        %v1430 = vor.u32 %v1426, %v1429
        %v1431 = vsel %vm1351, %v1421, %v1430
        %v1433 = vshrl.u32 %v1106, 16
        %v1435 = vrot.slane %v1433, 1
        %v1436 = vshll.u32 %v1106, 16
        %v1438 = vrot.slane %v1436, 2
        %v1439 = vor.u32 %v1435, %v1438
        %v1440 = vsel %vm1351, %v1430, %v1439
        %v1442 = vshrl.u32 %v1107, 16
        %v1444 = vrot.slane %v1442, 1
        %v1445 = vshll.u32 %v1107, 16
        %v1447 = vrot.slane %v1445, 2
        %v1448 = vor.u32 %v1444, %v1447
        %v1449 = vsel %vm1351, %v1439, %v1448
        %v1451 = vshrl.u32 %v1108, 16
        %v1453 = vrot.slane %v1451, 1
        %v1454 = vshll.u32 %v1108, 16
        %v1456 = vrot.slane %v1454, 2
        %v1457 = vor.u32 %v1453, %v1456
        %v1458 = vsel %vm1351, %v1448, %v1457
        %v1460 = vshrl.u32 %v1109, 16
        %v1462 = vrot.slane %v1460, 1
        %v1463 = vshll.u32 %v1109, 16
        %v1465 = vrot.slane %v1463, 2
        %v1466 = vor.u32 %v1462, %v1465
        %v1467 = vsel %vm1351, %v1457, %v1466
        %v1469 = vshrl.u32 %v1110, 16
        %v1471 = vrot.slane %v1469, 1
        %v1472 = vshll.u32 %v1110, 16
        %v1474 = vrot.slane %v1472, 2
        %v1475 = vor.u32 %v1471, %v1474
        %v1476 = vsel %vm1351, %v1466, %v1475
        %v1478 = vshrl.u32 %v1111, 16
        %v1480 = vrot.slane %v1478, 1
        %v1481 = vshll.u32 %v1111, 16
        %v1483 = vrot.slane %v1481, 2
        %v1484 = vor.u32 %v1480, %v1483
        %v1485 = vsel %vm1351, %v1475, %v1484
        %v1487 = vshrl.u32 %v1112, 16
        %v1489 = vrot.slane %v1487, 1
        %v1490 = vshll.u32 %v1112, 16
        %v1492 = vrot.slane %v1490, 2
        %v1493 = vor.u32 %v1489, %v1492
        %v1494 = vsel %vm1351, %v1484, %v1493
        %v1496 = vshrl.u32 %v1113, 16
        %v1498 = vrot.slane %v1496, 1
        %v1499 = vshll.u32 %v1113, 16
        %v1501 = vrot.slane %v1499, 2
        %v1502 = vor.u32 %v1498, %v1501
        %v1503 = vsel %vm1351, %v1493, %v1502
        %v1505 = vshrl.u32 %v1114, 16
        %v1507 = vrot.slane %v1505, 1
        %v1508 = vshll.u32 %v1114, 16
        %v1510 = vrot.slane %v1508, 2
        %v1511 = vor.u32 %v1507, %v1510
        %v1512 = vsel %vm1351, %v1502, %v1511
        %v1514 = vshrl.u32 %v1350, 16
        %v1516 = vrot.slane %v1514, 1
        %v1517 = vshll.u32 %v1350, 16
        %v1519 = vrot.slane %v1517, 2
        %v1520 = vor.u32 %v1516, %v1519
        %v1521 = vsel %vm1351, %v1511, %v1520
        %v1523 = vsel %vm452, %v1368, 0
        %v1526 = vsel %vm452, %v1377, 0
        %v1529 = vsel %vm452, %v1386, 0
        %v1532 = vsel %vm452, %v1395, 0
        %v1535 = vsel %vm452, %v1404, 0
        %v1538 = vsel %vm452, %v1413, 0
        %v1541 = vsel %vm452, %v1422, 0
        %v1544 = vsel %vm452, %v1431, 0
        %v1547 = vsel %vm452, %v1440, 0
        %v1550 = vsel %vm452, %v1449, 0
        %v1553 = vsel %vm452, %v1458, 0
        %v1556 = vsel %vm452, %v1467, 0
        %v1559 = vsel %vm452, %v1476, 0
        %v1562 = vsel %vm452, %v1485, 0
        %v1565 = vsel %vm452, %v1494, 0
        %v1568 = vsel %vm452, %v1503, 0
        %v1571 = vsel %vm452, %v1512, 0
        %v1574 = vsel %vm452, %v1521, 0
        %v1577 = vsel %vm507, %v1347, 0
        %1579 = vmatpush.bf16.msra.mxu0 0
        %1580 = vmatpush.bf16.msra.mxu0 0
        %1581 = vmatpush.bf16.msra.mxu0 0
        %1582 = vmatpush.bf16.msra.mxu0 0
        %1583 = vmatpush.bf16.msra.mxu0 0
        %1584 = vmatpush.bf16.msra.mxu0 0
        %1585 = vmatpush.bf16.msra.mxu0 0
        %1586 = vmatpush.bf16.msra.mxu0 %v1577
        %1587 = vmatmul.bf16.gmra.mxu0 %v1523
        %v1588 = vpop.f32.mrf.mxu0
        %v1589 = vadd.f32 0.0, %v1588
        %v1590 = vpop.f32.mrf.mxu0
        %v1591 = vadd.f32 0.0, %v1590
        %1592 = vmatmul.bf16.gmra.mxu0 %v1526
        %v1593 = vpop.f32.mrf.mxu0
        %v1594 = vadd.f32 0.0, %v1593
        %v1595 = vpop.f32.mrf.mxu0
        %v1596 = vadd.f32 0.0, %v1595
        %1597 = vmatmul.bf16.gmra.mxu0 %v1529
        %v1598 = vpop.f32.mrf.mxu0
        %v1599 = vadd.f32 0.0, %v1598
        %v1600 = vpop.f32.mrf.mxu0
        %v1601 = vadd.f32 0.0, %v1600
        %1602 = vmatmul.bf16.gmra.mxu0 %v1532
        %v1603 = vpop.f32.mrf.mxu0
        %v1604 = vadd.f32 0.0, %v1603
        %v1605 = vpop.f32.mrf.mxu0
        %v1606 = vadd.f32 0.0, %v1605
        %1607 = vmatmul.bf16.gmra.mxu0 %v1535
        %v1608 = vpop.f32.mrf.mxu0
        %v1609 = vadd.f32 0.0, %v1608
        %v1610 = vpop.f32.mrf.mxu0
        %v1611 = vadd.f32 0.0, %v1610
        %1612 = vmatmul.bf16.gmra.mxu0 %v1538
        %v1613 = vpop.f32.mrf.mxu0
        %v1614 = vadd.f32 0.0, %v1613
        %v1615 = vpop.f32.mrf.mxu0
        %v1616 = vadd.f32 0.0, %v1615
        %1617 = vmatmul.bf16.gmra.mxu0 %v1541
        %v1618 = vpop.f32.mrf.mxu0
        %v1619 = vadd.f32 0.0, %v1618
        %v1620 = vpop.f32.mrf.mxu0
        %v1621 = vadd.f32 0.0, %v1620
        %1622 = vmatmul.bf16.gmra.mxu0 %v1544
        %v1623 = vpop.f32.mrf.mxu0
        %v1624 = vadd.f32 0.0, %v1623
        %v1625 = vpop.f32.mrf.mxu0
        %v1626 = vadd.f32 0.0, %v1625
        %1627 = vmatmul.bf16.gmra.mxu0 %v1547
        %v1628 = vpop.f32.mrf.mxu0
        %v1629 = vadd.f32 0.0, %v1628
        %v1630 = vpop.f32.mrf.mxu0
        %v1631 = vadd.f32 0.0, %v1630
        %1632 = vmatmul.bf16.gmra.mxu0 %v1550
        %v1633 = vpop.f32.mrf.mxu0
        %v1634 = vadd.f32 0.0, %v1633
        %v1635 = vpop.f32.mrf.mxu0
        %v1636 = vadd.f32 0.0, %v1635
        %1637 = vmatmul.bf16.gmra.mxu0 %v1553
        %v1638 = vpop.f32.mrf.mxu0
        %v1639 = vadd.f32 0.0, %v1638
        %v1640 = vpop.f32.mrf.mxu0
        %v1641 = vadd.f32 0.0, %v1640
        %1642 = vmatmul.bf16.gmra.mxu0 %v1556
        %v1643 = vpop.f32.mrf.mxu0
        %v1644 = vadd.f32 0.0, %v1643
        %v1645 = vpop.f32.mrf.mxu0
        %v1646 = vadd.f32 0.0, %v1645
        %1647 = vmatmul.bf16.gmra.mxu0 %v1559
        %v1648 = vpop.f32.mrf.mxu0
        %v1649 = vadd.f32 0.0, %v1648
        %v1650 = vpop.f32.mrf.mxu0
        %v1651 = vadd.f32 0.0, %v1650
        %1652 = vmatmul.bf16.gmra.mxu0 %v1562
        %v1653 = vpop.f32.mrf.mxu0
        %v1654 = vadd.f32 0.0, %v1653
        %v1655 = vpop.f32.mrf.mxu0
        %v1656 = vadd.f32 0.0, %v1655
        %1657 = vmatmul.bf16.gmra.mxu0 %v1565
        %v1658 = vpop.f32.mrf.mxu0
        %v1659 = vadd.f32 0.0, %v1658
        %v1660 = vpop.f32.mrf.mxu0
        %v1661 = vadd.f32 0.0, %v1660
        %1662 = vmatmul.bf16.gmra.mxu0 %v1568
        %v1663 = vpop.f32.mrf.mxu0
        %v1664 = vadd.f32 0.0, %v1663
        %v1665 = vpop.f32.mrf.mxu0
        %v1666 = vadd.f32 0.0, %v1665
        %1667 = vmatmul.bf16.gmra.mxu0 %v1571
        %v1668 = vpop.f32.mrf.mxu0
        %v1669 = vadd.f32 0.0, %v1668
        %v1670 = vpop.f32.mrf.mxu0
        %v1671 = vadd.f32 0.0, %v1670
        %1672 = vmatmul.bf16.gmra.mxu0 %v1574
        %v1673 = vpop.f32.mrf.mxu0
        %v1674 = vadd.f32 0.0, %v1673
        %v1675 = vpop.f32.mrf.mxu0
        %v1676 = vadd.f32 0.0, %v1675
        %1677 = vdwg.mxu0
        %v1678 = vadd.f32 %v1309, %v1589
        %v1679 = vadd.f32 %v1310, %v1591
        %v1680 = vadd.f32 %v1311, %v1594
        %v1681 = vadd.f32 %v1312, %v1596
        %v1682 = vadd.f32 %v1313, %v1599
        %v1683 = vadd.f32 %v1314, %v1601
        %v1684 = vadd.f32 %v1315, %v1604
        %v1685 = vadd.f32 %v1316, %v1606
        %v1686 = vadd.f32 %v1317, %v1609
        %v1687 = vadd.f32 %v1318, %v1611
        %v1688 = vadd.f32 %v1319, %v1614
        %v1689 = vadd.f32 %v1320, %v1616
        %v1690 = vadd.f32 %v1321, %v1619
        %v1691 = vadd.f32 %v1322, %v1621
        %v1692 = vadd.f32 %v1323, %v1624
        %v1693 = vadd.f32 %v1324, %v1626
        %v1694 = vadd.f32 %v1325, %v1629
        %v1695 = vadd.f32 %v1326, %v1631
        %v1696 = vadd.f32 %v1327, %v1634
        %v1697 = vadd.f32 %v1328, %v1636
        %v1698 = vadd.f32 %v1329, %v1639
        %v1699 = vadd.f32 %v1330, %v1641
        %v1700 = vadd.f32 %v1331, %v1644
        %v1701 = vadd.f32 %v1332, %v1646
        %v1702 = vadd.f32 %v1333, %v1649
        %v1703 = vadd.f32 %v1334, %v1651
        %v1704 = vadd.f32 %v1335, %v1654
        %v1705 = vadd.f32 %v1336, %v1656
        %v1706 = vadd.f32 %v1337, %v1659
        %v1707 = vadd.f32 %v1338, %v1661
        %v1708 = vadd.f32 %v1339, %v1664
        %v1709 = vadd.f32 %v1340, %v1666
        %v1710 = vadd.f32 %v1341, %v1669
        %v1711 = vadd.f32 %v1342, %v1671
        %v1712 = vadd.f32 %v1343, %v1674
        %v1713 = vadd.f32 %v1344, %v1676
        %v1714 = vld [vmem:[%s168 + $0x8] sm:$0xc]
        %s1715 = scalar_lea.vmem %s1, 10
        %v1716 = vld [vmem:[%s1715] sm:$0x3]
        %v1718 = vunpack.c.l.b16 %v1714
        %v1719 = vpack.c.b16 %v1061, %v1718
        %vm1720 = vcmask 1045504
        %v1721 = vrot.slane %v1719, 2
        %v1722 = vrot.slane %v1098, 2
        %v1723 = vsel %vm1720, %v1721, %v1722
        %v1724 = vrot.slane %v1099, 2
        %v1725 = vsel %vm1720, %v1722, %v1724
        %v1726 = vrot.slane %v1100, 2
        %v1727 = vsel %vm1720, %v1724, %v1726
        %v1728 = vrot.slane %v1101, 2
        %v1729 = vsel %vm1720, %v1726, %v1728
        %v1730 = vrot.slane %v1102, 2
        %v1731 = vsel %vm1720, %v1728, %v1730
        %v1732 = vrot.slane %v1103, 2
        %v1733 = vsel %vm1720, %v1730, %v1732
        %v1734 = vrot.slane %v1104, 2
        %v1735 = vsel %vm1720, %v1732, %v1734
        %v1736 = vrot.slane %v1105, 2
        %v1737 = vsel %vm1720, %v1734, %v1736
        %v1738 = vrot.slane %v1106, 2
        %v1739 = vsel %vm1720, %v1736, %v1738
        %v1740 = vrot.slane %v1107, 2
        %v1741 = vsel %vm1720, %v1738, %v1740
        %v1742 = vrot.slane %v1108, 2
        %v1743 = vsel %vm1720, %v1740, %v1742
        %v1744 = vrot.slane %v1109, 2
        %v1745 = vsel %vm1720, %v1742, %v1744
        %v1746 = vrot.slane %v1110, 2
        %v1747 = vsel %vm1720, %v1744, %v1746
        %v1748 = vrot.slane %v1111, 2
        %v1749 = vsel %vm1720, %v1746, %v1748
        %v1750 = vrot.slane %v1112, 2
        %v1751 = vsel %vm1720, %v1748, %v1750
        %v1752 = vrot.slane %v1113, 2
        %v1753 = vsel %vm1720, %v1750, %v1752
        %v1754 = vrot.slane %v1114, 2
        %v1755 = vsel %vm1720, %v1752, %v1754
        %v1756 = vrot.slane %v1350, 2
        %v1757 = vsel %vm1720, %v1754, %v1756
        %v1759 = vsel %vm452, %v1723, 0
        %v1762 = vsel %vm452, %v1725, 0
        %v1765 = vsel %vm452, %v1727, 0
        %v1768 = vsel %vm452, %v1729, 0
        %v1771 = vsel %vm452, %v1731, 0
        %v1774 = vsel %vm452, %v1733, 0
        %v1777 = vsel %vm452, %v1735, 0
        %v1780 = vsel %vm452, %v1737, 0
        %v1783 = vsel %vm452, %v1739, 0
        %v1786 = vsel %vm452, %v1741, 0
        %v1789 = vsel %vm452, %v1743, 0
        %v1792 = vsel %vm452, %v1745, 0
        %v1795 = vsel %vm452, %v1747, 0
        %v1798 = vsel %vm452, %v1749, 0
        %v1801 = vsel %vm452, %v1751, 0
        %v1804 = vsel %vm452, %v1753, 0
        %v1807 = vsel %vm452, %v1755, 0
        %v1810 = vsel %vm452, %v1757, 0
        %v1813 = vsel %vm507, %v1716, 0
        %1815 = vmatpush.bf16.msra.mxu0 0
        %1816 = vmatpush.bf16.msra.mxu0 0
        %1817 = vmatpush.bf16.msra.mxu0 0
        %1818 = vmatpush.bf16.msra.mxu0 0
        %1819 = vmatpush.bf16.msra.mxu0 0
        %1820 = vmatpush.bf16.msra.mxu0 0
        %1821 = vmatpush.bf16.msra.mxu0 0
        %1822 = vmatpush.bf16.msra.mxu0 %v1813
        %1823 = vmatmul.bf16.gmra.mxu0 %v1759
        %v1824 = vpop.f32.mrf.mxu0
        %v1825 = vadd.f32 0.0, %v1824
        %v1826 = vpop.f32.mrf.mxu0
        %v1827 = vadd.f32 0.0, %v1826
        %1828 = vmatmul.bf16.gmra.mxu0 %v1762
        %v1829 = vpop.f32.mrf.mxu0
        %v1830 = vadd.f32 0.0, %v1829
        %v1831 = vpop.f32.mrf.mxu0
        %v1832 = vadd.f32 0.0, %v1831
        %1833 = vmatmul.bf16.gmra.mxu0 %v1765
        %v1834 = vpop.f32.mrf.mxu0
        %v1835 = vadd.f32 0.0, %v1834
        %v1836 = vpop.f32.mrf.mxu0
        %v1837 = vadd.f32 0.0, %v1836
        %1838 = vmatmul.bf16.gmra.mxu0 %v1768
        %v1839 = vpop.f32.mrf.mxu0
        %v1840 = vadd.f32 0.0, %v1839
        %v1841 = vpop.f32.mrf.mxu0
        %v1842 = vadd.f32 0.0, %v1841
        %1843 = vmatmul.bf16.gmra.mxu0 %v1771
        %v1844 = vpop.f32.mrf.mxu0
        %v1845 = vadd.f32 0.0, %v1844
        %v1846 = vpop.f32.mrf.mxu0
        %v1847 = vadd.f32 0.0, %v1846
        %1848 = vmatmul.bf16.gmra.mxu0 %v1774
        %v1849 = vpop.f32.mrf.mxu0
        %v1850 = vadd.f32 0.0, %v1849
        %v1851 = vpop.f32.mrf.mxu0
        %v1852 = vadd.f32 0.0, %v1851
        %1853 = vmatmul.bf16.gmra.mxu0 %v1777
        %v1854 = vpop.f32.mrf.mxu0
        %v1855 = vadd.f32 0.0, %v1854
        %v1856 = vpop.f32.mrf.mxu0
        %v1857 = vadd.f32 0.0, %v1856
        %1858 = vmatmul.bf16.gmra.mxu0 %v1780
        %v1859 = vpop.f32.mrf.mxu0
        %v1860 = vadd.f32 0.0, %v1859
        %v1861 = vpop.f32.mrf.mxu0
        %v1862 = vadd.f32 0.0, %v1861
        %1863 = vmatmul.bf16.gmra.mxu0 %v1783
        %v1864 = vpop.f32.mrf.mxu0
        %v1865 = vadd.f32 0.0, %v1864
        %v1866 = vpop.f32.mrf.mxu0
        %v1867 = vadd.f32 0.0, %v1866
        %1868 = vmatmul.bf16.gmra.mxu0 %v1786
        %v1869 = vpop.f32.mrf.mxu0
        %v1870 = vadd.f32 0.0, %v1869
        %v1871 = vpop.f32.mrf.mxu0
        %v1872 = vadd.f32 0.0, %v1871
        %1873 = vmatmul.bf16.gmra.mxu0 %v1789
        %v1874 = vpop.f32.mrf.mxu0
        %v1875 = vadd.f32 0.0, %v1874
        %v1876 = vpop.f32.mrf.mxu0
        %v1877 = vadd.f32 0.0, %v1876
        %1878 = vmatmul.bf16.gmra.mxu0 %v1792
        %v1879 = vpop.f32.mrf.mxu0
        %v1880 = vadd.f32 0.0, %v1879
        %v1881 = vpop.f32.mrf.mxu0
        %v1882 = vadd.f32 0.0, %v1881
        %1883 = vmatmul.bf16.gmra.mxu0 %v1795
        %v1884 = vpop.f32.mrf.mxu0
        %v1885 = vadd.f32 0.0, %v1884
        %v1886 = vpop.f32.mrf.mxu0
        %v1887 = vadd.f32 0.0, %v1886
        %1888 = vmatmul.bf16.gmra.mxu0 %v1798
        %v1889 = vpop.f32.mrf.mxu0
        %v1890 = vadd.f32 0.0, %v1889
        %v1891 = vpop.f32.mrf.mxu0
        %v1892 = vadd.f32 0.0, %v1891
        %1893 = vmatmul.bf16.gmra.mxu0 %v1801
        %v1894 = vpop.f32.mrf.mxu0
        %v1895 = vadd.f32 0.0, %v1894
        %v1896 = vpop.f32.mrf.mxu0
        %v1897 = vadd.f32 0.0, %v1896
        %1898 = vmatmul.bf16.gmra.mxu0 %v1804
        %v1899 = vpop.f32.mrf.mxu0
        %v1900 = vadd.f32 0.0, %v1899
        %v1901 = vpop.f32.mrf.mxu0
        %v1902 = vadd.f32 0.0, %v1901
        %1903 = vmatmul.bf16.gmra.mxu0 %v1807
        %v1904 = vpop.f32.mrf.mxu0
        %v1905 = vadd.f32 0.0, %v1904
        %v1906 = vpop.f32.mrf.mxu0
        %v1907 = vadd.f32 0.0, %v1906
        %1908 = vmatmul.bf16.gmra.mxu0 %v1810
        %v1909 = vpop.f32.mrf.mxu0
        %v1910 = vadd.f32 0.0, %v1909
        %v1911 = vpop.f32.mrf.mxu0
        %v1912 = vadd.f32 0.0, %v1911
        %1913 = vdwg.mxu0
        %v1914 = vadd.f32 %v1678, %v1825
        %v1915 = vadd.f32 %v1679, %v1827
        %v1916 = vadd.f32 %v1680, %v1830
        %v1917 = vadd.f32 %v1681, %v1832
        %v1918 = vadd.f32 %v1682, %v1835
        %v1919 = vadd.f32 %v1683, %v1837
        %v1920 = vadd.f32 %v1684, %v1840
        %v1921 = vadd.f32 %v1685, %v1842
        %v1922 = vadd.f32 %v1686, %v1845
        %v1923 = vadd.f32 %v1687, %v1847
        %v1924 = vadd.f32 %v1688, %v1850
        %v1925 = vadd.f32 %v1689, %v1852
        %v1926 = vadd.f32 %v1690, %v1855
        %v1927 = vadd.f32 %v1691, %v1857
        %v1928 = vadd.f32 %v1692, %v1860
        %v1929 = vadd.f32 %v1693, %v1862
        %v1930 = vadd.f32 %v1694, %v1865
        %v1931 = vadd.f32 %v1695, %v1867
        %v1932 = vadd.f32 %v1696, %v1870
        %v1933 = vadd.f32 %v1697, %v1872
        %v1934 = vadd.f32 %v1698, %v1875
        %v1935 = vadd.f32 %v1699, %v1877
        %v1936 = vadd.f32 %v1700, %v1880
        %v1937 = vadd.f32 %v1701, %v1882
        %v1938 = vadd.f32 %v1702, %v1885
        %v1939 = vadd.f32 %v1703, %v1887
        %v1940 = vadd.f32 %v1704, %v1890
        %v1941 = vadd.f32 %v1705, %v1892
        %v1942 = vadd.f32 %v1706, %v1895
        %v1943 = vadd.f32 %v1707, %v1897
        %v1944 = vadd.f32 %v1708, %v1900
        %v1945 = vadd.f32 %v1709, %v1902
        %v1946 = vadd.f32 %v1710, %v1905
        %v1947 = vadd.f32 %v1711, %v1907
        %v1948 = vadd.f32 %v1712, %v1910
        %v1949 = vadd.f32 %v1713, %v1912
        %v1950 = vld [vmem:[%s168 + $0x10] sm:$0xc]
        %v1951 = vld [vmem:[%s168 + $0x14] sm:$0xf]
        %v1952 = vld [vmem:[%s168 + $0x18] sm:$0xf]
        %v1953 = vld [vmem:[%s168 + $0x1c] sm:$0xf]
        %v1954 = vld [vmem:[%s168 + $0x20] sm:$0xf]
        %v1955 = vld [vmem:[%s168 + $0x24] sm:$0xf]
        %v1956 = vld [vmem:[%s168 + $0x28] sm:$0xf]
        %v1957 = vld [vmem:[%s168 + $0x2c] sm:$0xf]
        %v1958 = vld [vmem:[%s168 + $0x30] sm:$0xf]
        %v1959 = vld [vmem:[%s168 + $0x34] sm:$0xf]
        %v1960 = vld [vmem:[%s168 + $0x38] sm:$0xf]
        %v1961 = vld [vmem:[%s168 + $0x3c] sm:$0xf]
        %v1962 = vld [vmem:[%s168 + $0x40] sm:$0xf]
        %v1963 = vld [vmem:[%s168 + $0x44] sm:$0xf]
        %v1964 = vld [vmem:[%s168 + $0x48] sm:$0xf]
        %v1965 = vld [vmem:[%s168 + $0x4c] sm:$0xf]
        %v1966 = vld [vmem:[%s168 + $0x50] sm:$0xf]
        %v1967 = vld [vmem:[%s168 + $0x54] sm:$0xf]
        %v1968 = vld [vmem:[%s168 + $0x58] sm:$0xf]
        %v1969 = vld [vmem:[%s168 + $0x5c] sm:$0xf]
        %v1970 = vld [vmem:[%s168 + $0x60] sm:$0xf]
        %v1971 = vld [vmem:[%s168 + $0x64] sm:$0xf]
        %v1972 = vld [vmem:[%s168 + $0x68] sm:$0xf]
        %v1973 = vld [vmem:[%s168 + $0x6c] sm:$0xf]
        %v1974 = vld [vmem:[%s168 + $0x70] sm:$0xf]
        %v1975 = vld [vmem:[%s168 + $0x74] sm:$0xf]
        %v1976 = vld [vmem:[%s168 + $0x78] sm:$0xf]
        %v1977 = vld [vmem:[%s168 + $0x7c] sm:$0xf]
        %v1978 = vld [vmem:[%s168 + $0x80] sm:$0xf]
        %v1979 = vld [vmem:[%s168 + $0x84] sm:$0xf]
        %v1980 = vld [vmem:[%s168 + $0x88] sm:$0xf]
        %v1981 = vld [vmem:[%s168 + $0x8c] sm:$0xf]
        %v1982 = vld [vmem:[%s168 + $0x90] sm:$0xf]
        %v1983 = vld [vmem:[%s168 + $0x94] sm:$0xf]
        %v1984 = vld [vmem:[%s168 + $0x98] sm:$0xf]
        %v1985 = vld [vmem:[%s168 + $0x9c] sm:$0xf]
        %v1986 = vld [vmem:[%s168 + $0xa0] sm:$0x3]
        %s1987 = scalar_lea.vmem %s1, 12
        %v1988 = vld [vmem:[%s1987] sm:$0x3]
        %v2026 = vunpack.c.l.b16 %v1950
        %v2027 = vunpack.c.l.b16 %v1951
        %v2028 = vunpack.c.l.b16 %v1952
        %v2029 = vunpack.c.l.b16 %v1953
        %v2030 = vunpack.c.l.b16 %v1954
        %v2031 = vunpack.c.l.b16 %v1955
        %v2032 = vunpack.c.l.b16 %v1956
        %v2033 = vunpack.c.l.b16 %v1957
        %v2034 = vunpack.c.l.b16 %v1958
        %v2035 = vunpack.c.l.b16 %v1959
        %v2036 = vunpack.c.l.b16 %v1960
        %v2037 = vunpack.c.l.b16 %v1961
        %v2038 = vunpack.c.l.b16 %v1962
        %v2039 = vunpack.c.l.b16 %v1963
        %v2040 = vunpack.c.l.b16 %v1964
        %v2041 = vunpack.c.l.b16 %v1965
        %v2042 = vunpack.c.l.b16 %v1966
        %v2043 = vunpack.c.l.b16 %v1967
        %v2044 = vunpack.c.l.b16 %v1968
        %v2045 = vunpack.c.l.b16 %v1969
        %v2046 = vunpack.c.l.b16 %v1970
        %v2047 = vunpack.c.l.b16 %v1971
        %v2048 = vunpack.c.l.b16 %v1972
        %v2049 = vunpack.c.l.b16 %v1973
        %v2050 = vunpack.c.l.b16 %v1974
        %v2051 = vunpack.c.l.b16 %v1975
        %v2052 = vunpack.c.l.b16 %v1976
        %v2053 = vunpack.c.l.b16 %v1977
        %v2054 = vunpack.c.l.b16 %v1978
        %v2055 = vunpack.c.l.b16 %v1979
        %v2056 = vunpack.c.l.b16 %v1980
        %v2057 = vunpack.c.l.b16 %v1981
        %v2058 = vunpack.c.l.b16 %v1982
        %v2059 = vunpack.c.l.b16 %v1983
        %v2060 = vunpack.c.l.b16 %v1984
        %v2061 = vunpack.c.l.b16 %v1985
        %v2062 = vunpack.c.l.b16 %v1986
        %v2063 = vpack.c.b16 %v2027, %v2026
        %v2064 = vpack.c.b16 %v2029, %v2028
        %v2065 = vpack.c.b16 %v2031, %v2030
        %v2066 = vpack.c.b16 %v2033, %v2032
        %v2067 = vpack.c.b16 %v2035, %v2034
        %v2068 = vpack.c.b16 %v2037, %v2036
        %v2069 = vpack.c.b16 %v2039, %v2038
        %v2070 = vpack.c.b16 %v2041, %v2040
        %v2071 = vpack.c.b16 %v2043, %v2042
        %v2072 = vpack.c.b16 %v2045, %v2044
        %v2073 = vpack.c.b16 %v2047, %v2046
        %v2074 = vpack.c.b16 %v2049, %v2048
        %v2075 = vpack.c.b16 %v2051, %v2050
        %v2076 = vpack.c.b16 %v2053, %v2052
        %v2077 = vpack.c.b16 %v2055, %v2054
        %v2078 = vpack.c.b16 %v2057, %v2056
        %v2079 = vpack.c.b16 %v2059, %v2058
        %v2080 = vpack.c.b16 %v2061, %v2060
        %v2081 = vpack.c.b16 %v2062, %v2062
        %v2082 = vrot.slane %v2063, 2
        %v2083 = vrot.slane %v2064, 2
        %v2084 = vsel %vm1720, %v2082, %v2083
        %v2085 = vrot.slane %v2065, 2
        %v2086 = vsel %vm1720, %v2083, %v2085
        %v2087 = vrot.slane %v2066, 2
        %v2088 = vsel %vm1720, %v2085, %v2087
        %v2089 = vrot.slane %v2067, 2
        %v2090 = vsel %vm1720, %v2087, %v2089
        %v2091 = vrot.slane %v2068, 2
        %v2092 = vsel %vm1720, %v2089, %v2091
        %v2093 = vrot.slane %v2069, 2
        %v2094 = vsel %vm1720, %v2091, %v2093
        %v2095 = vrot.slane %v2070, 2
        %v2096 = vsel %vm1720, %v2093, %v2095
        %v2097 = vrot.slane %v2071, 2
        %v2098 = vsel %vm1720, %v2095, %v2097
        %v2099 = vrot.slane %v2072, 2
        %v2100 = vsel %vm1720, %v2097, %v2099
        %v2101 = vrot.slane %v2073, 2
        %v2102 = vsel %vm1720, %v2099, %v2101
        %v2103 = vrot.slane %v2074, 2
        %v2104 = vsel %vm1720, %v2101, %v2103
        %v2105 = vrot.slane %v2075, 2
        %v2106 = vsel %vm1720, %v2103, %v2105
        %v2107 = vrot.slane %v2076, 2
        %v2108 = vsel %vm1720, %v2105, %v2107
        %v2109 = vrot.slane %v2077, 2
        %v2110 = vsel %vm1720, %v2107, %v2109
        %v2111 = vrot.slane %v2078, 2
        %v2112 = vsel %vm1720, %v2109, %v2111
        %v2113 = vrot.slane %v2079, 2
        %v2114 = vsel %vm1720, %v2111, %v2113
        %v2115 = vrot.slane %v2080, 2
        %v2116 = vsel %vm1720, %v2113, %v2115
        %v2117 = vrot.slane %v2081, 2
        %v2118 = vsel %vm1720, %v2115, %v2117
        %v2120 = vsel %vm452, %v2084, 0
        %v2123 = vsel %vm452, %v2086, 0
        %v2126 = vsel %vm452, %v2088, 0
        %v2129 = vsel %vm452, %v2090, 0
        %v2132 = vsel %vm452, %v2092, 0
        %v2135 = vsel %vm452, %v2094, 0
        %v2138 = vsel %vm452, %v2096, 0
        %v2141 = vsel %vm452, %v2098, 0
        %v2144 = vsel %vm452, %v2100, 0
        %v2147 = vsel %vm452, %v2102, 0
        %v2150 = vsel %vm452, %v2104, 0
        %v2153 = vsel %vm452, %v2106, 0
        %v2156 = vsel %vm452, %v2108, 0
        %v2159 = vsel %vm452, %v2110, 0
        %v2162 = vsel %vm452, %v2112, 0
        %v2165 = vsel %vm452, %v2114, 0
        %v2168 = vsel %vm452, %v2116, 0
        %v2171 = vsel %vm452, %v2118, 0
        %v2174 = vsel %vm507, %v1988, 0
        %2176 = vmatpush.bf16.msra.mxu0 0
        %2177 = vmatpush.bf16.msra.mxu0 0
        %2178 = vmatpush.bf16.msra.mxu0 0
        %2179 = vmatpush.bf16.msra.mxu0 0
        %2180 = vmatpush.bf16.msra.mxu0 0
        %2181 = vmatpush.bf16.msra.mxu0 0
        %2182 = vmatpush.bf16.msra.mxu0 0
        %2183 = vmatpush.bf16.msra.mxu0 %v2174
        %2184 = vmatmul.bf16.gmra.mxu0 %v2120
        %v2185 = vpop.f32.mrf.mxu0
        %v2186 = vadd.f32 0.0, %v2185
        %v2187 = vpop.f32.mrf.mxu0
        %v2188 = vadd.f32 0.0, %v2187
        %2189 = vmatmul.bf16.gmra.mxu0 %v2123
        %v2190 = vpop.f32.mrf.mxu0
        %v2191 = vadd.f32 0.0, %v2190
        %v2192 = vpop.f32.mrf.mxu0
        %v2193 = vadd.f32 0.0, %v2192
        %2194 = vmatmul.bf16.gmra.mxu0 %v2126
        %v2195 = vpop.f32.mrf.mxu0
        %v2196 = vadd.f32 0.0, %v2195
        %v2197 = vpop.f32.mrf.mxu0
        %v2198 = vadd.f32 0.0, %v2197
        %2199 = vmatmul.bf16.gmra.mxu0 %v2129
        %v2200 = vpop.f32.mrf.mxu0
        %v2201 = vadd.f32 0.0, %v2200
        %v2202 = vpop.f32.mrf.mxu0
        %v2203 = vadd.f32 0.0, %v2202
        %2204 = vmatmul.bf16.gmra.mxu0 %v2132
        %v2205 = vpop.f32.mrf.mxu0
        %v2206 = vadd.f32 0.0, %v2205
        %v2207 = vpop.f32.mrf.mxu0
        %v2208 = vadd.f32 0.0, %v2207
        %2209 = vmatmul.bf16.gmra.mxu0 %v2135
        %v2210 = vpop.f32.mrf.mxu0
        %v2211 = vadd.f32 0.0, %v2210
        %v2212 = vpop.f32.mrf.mxu0
        %v2213 = vadd.f32 0.0, %v2212
        %2214 = vmatmul.bf16.gmra.mxu0 %v2138
        %v2215 = vpop.f32.mrf.mxu0
        %v2216 = vadd.f32 0.0, %v2215
        %v2217 = vpop.f32.mrf.mxu0
        %v2218 = vadd.f32 0.0, %v2217
        %2219 = vmatmul.bf16.gmra.mxu0 %v2141
        %v2220 = vpop.f32.mrf.mxu0
        %v2221 = vadd.f32 0.0, %v2220
        %v2222 = vpop.f32.mrf.mxu0
        %v2223 = vadd.f32 0.0, %v2222
        %2224 = vmatmul.bf16.gmra.mxu0 %v2144
        %v2225 = vpop.f32.mrf.mxu0
        %v2226 = vadd.f32 0.0, %v2225
        %v2227 = vpop.f32.mrf.mxu0
        %v2228 = vadd.f32 0.0, %v2227
        %2229 = vmatmul.bf16.gmra.mxu0 %v2147
        %v2230 = vpop.f32.mrf.mxu0
        %v2231 = vadd.f32 0.0, %v2230
        %v2232 = vpop.f32.mrf.mxu0
        %v2233 = vadd.f32 0.0, %v2232
        %2234 = vmatmul.bf16.gmra.mxu0 %v2150
        %v2235 = vpop.f32.mrf.mxu0
        %v2236 = vadd.f32 0.0, %v2235
        %v2237 = vpop.f32.mrf.mxu0
        %v2238 = vadd.f32 0.0, %v2237
        %2239 = vmatmul.bf16.gmra.mxu0 %v2153
        %v2240 = vpop.f32.mrf.mxu0
        %v2241 = vadd.f32 0.0, %v2240
        %v2242 = vpop.f32.mrf.mxu0
        %v2243 = vadd.f32 0.0, %v2242
        %2244 = vmatmul.bf16.gmra.mxu0 %v2156
        %v2245 = vpop.f32.mrf.mxu0
        %v2246 = vadd.f32 0.0, %v2245
        %v2247 = vpop.f32.mrf.mxu0
        %v2248 = vadd.f32 0.0, %v2247
        %2249 = vmatmul.bf16.gmra.mxu0 %v2159
        %v2250 = vpop.f32.mrf.mxu0
        %v2251 = vadd.f32 0.0, %v2250
        %v2252 = vpop.f32.mrf.mxu0
        %v2253 = vadd.f32 0.0, %v2252
        %2254 = vmatmul.bf16.gmra.mxu0 %v2162
        %v2255 = vpop.f32.mrf.mxu0
        %v2256 = vadd.f32 0.0, %v2255
        %v2257 = vpop.f32.mrf.mxu0
        %v2258 = vadd.f32 0.0, %v2257
        %2259 = vmatmul.bf16.gmra.mxu0 %v2165
        %v2260 = vpop.f32.mrf.mxu0
        %v2261 = vadd.f32 0.0, %v2260
        %v2262 = vpop.f32.mrf.mxu0
        %v2263 = vadd.f32 0.0, %v2262
        %2264 = vmatmul.bf16.gmra.mxu0 %v2168
        %v2265 = vpop.f32.mrf.mxu0
        %v2266 = vadd.f32 0.0, %v2265
        %v2267 = vpop.f32.mrf.mxu0
        %v2268 = vadd.f32 0.0, %v2267
        %2269 = vmatmul.bf16.gmra.mxu0 %v2171
        %v2270 = vpop.f32.mrf.mxu0
        %v2271 = vadd.f32 0.0, %v2270
        %v2272 = vpop.f32.mrf.mxu0
        %v2273 = vadd.f32 0.0, %v2272
        %2274 = vdwg.mxu0
        %v2275 = vadd.f32 %v1914, %v2186
        %v2276 = vadd.f32 %v1915, %v2188
        %v2277 = vadd.f32 %v1916, %v2191
        %v2278 = vadd.f32 %v1917, %v2193
        %v2279 = vadd.f32 %v1918, %v2196
        %v2280 = vadd.f32 %v1919, %v2198
        %v2281 = vadd.f32 %v1920, %v2201
        %v2282 = vadd.f32 %v1921, %v2203
        %v2283 = vadd.f32 %v1922, %v2206
        %v2284 = vadd.f32 %v1923, %v2208
        %v2285 = vadd.f32 %v1924, %v2211
        %v2286 = vadd.f32 %v1925, %v2213
        %v2287 = vadd.f32 %v1926, %v2216
        %v2288 = vadd.f32 %v1927, %v2218
        %v2289 = vadd.f32 %v1928, %v2221
        %v2290 = vadd.f32 %v1929, %v2223
        %v2291 = vadd.f32 %v1930, %v2226
        %v2292 = vadd.f32 %v1931, %v2228
        %v2293 = vadd.f32 %v1932, %v2231
        %v2294 = vadd.f32 %v1933, %v2233
        %v2295 = vadd.f32 %v1934, %v2236
        %v2296 = vadd.f32 %v1935, %v2238
        %v2297 = vadd.f32 %v1936, %v2241
        %v2298 = vadd.f32 %v1937, %v2243
        %v2299 = vadd.f32 %v1938, %v2246
        %v2300 = vadd.f32 %v1939, %v2248
        %v2301 = vadd.f32 %v1940, %v2251
        %v2302 = vadd.f32 %v1941, %v2253
        %v2303 = vadd.f32 %v1942, %v2256
        %v2304 = vadd.f32 %v1943, %v2258
        %v2305 = vadd.f32 %v1944, %v2261
        %v2306 = vadd.f32 %v1945, %v2263
        %v2307 = vadd.f32 %v1946, %v2266
        %v2308 = vadd.f32 %v1947, %v2268
        %v2309 = vadd.f32 %v1948, %v2271
        %v2310 = vadd.f32 %v1949, %v2273
        %v2311 = vld [vmem:[%s168 + $0xa0] sm:$0x7]
        %s2312 = scalar_lea.vmem %s1, 14
        %v2313 = vld [vmem:[%s2312] sm:$0x3]
        %v2315 = vunpack.c.l.b16 %v2311
        %v2316 = vpack.c.b16 %v2315, %v2315
        %vm2317 = vsmask.f32 5376
        %v2319 = vshrl.u32 %v2063, 16
        %v2321 = vrot.slane %v2319, 2
        %v2322 = vshll.u32 %v2063, 16
        %v2324 = vrot.slane %v2322, 3
        %v2325 = vor.u32 %v2321, %v2324
        %v2327 = vshrl.u32 %v2064, 16
        %v2329 = vrot.slane %v2327, 2
        %v2330 = vshll.u32 %v2064, 16
        %v2332 = vrot.slane %v2330, 3
        %v2333 = vor.u32 %v2329, %v2332
        %v2334 = vsel %vm2317, %v2325, %v2333
        %v2336 = vshrl.u32 %v2065, 16
        %v2338 = vrot.slane %v2336, 2
        %v2339 = vshll.u32 %v2065, 16
        %v2341 = vrot.slane %v2339, 3
        %v2342 = vor.u32 %v2338, %v2341
        %v2343 = vsel %vm2317, %v2333, %v2342
        %v2345 = vshrl.u32 %v2066, 16
        %v2347 = vrot.slane %v2345, 2
        %v2348 = vshll.u32 %v2066, 16
        %v2350 = vrot.slane %v2348, 3
        %v2351 = vor.u32 %v2347, %v2350
        %v2352 = vsel %vm2317, %v2342, %v2351
        %v2354 = vshrl.u32 %v2067, 16
        %v2356 = vrot.slane %v2354, 2
        %v2357 = vshll.u32 %v2067, 16
        %v2359 = vrot.slane %v2357, 3
        %v2360 = vor.u32 %v2356, %v2359
        %v2361 = vsel %vm2317, %v2351, %v2360
        %v2363 = vshrl.u32 %v2068, 16
        %v2365 = vrot.slane %v2363, 2
        %v2366 = vshll.u32 %v2068, 16
        %v2368 = vrot.slane %v2366, 3
        %v2369 = vor.u32 %v2365, %v2368
        %v2370 = vsel %vm2317, %v2360, %v2369
        %v2372 = vshrl.u32 %v2069, 16
        %v2374 = vrot.slane %v2372, 2
        %v2375 = vshll.u32 %v2069, 16
        %v2377 = vrot.slane %v2375, 3
        %v2378 = vor.u32 %v2374, %v2377
        %v2379 = vsel %vm2317, %v2369, %v2378
        %v2381 = vshrl.u32 %v2070, 16
        %v2383 = vrot.slane %v2381, 2
        %v2384 = vshll.u32 %v2070, 16
        %v2386 = vrot.slane %v2384, 3
        %v2387 = vor.u32 %v2383, %v2386
        %v2388 = vsel %vm2317, %v2378, %v2387
        %v2390 = vshrl.u32 %v2071, 16
        %v2392 = vrot.slane %v2390, 2
        %v2393 = vshll.u32 %v2071, 16
        %v2395 = vrot.slane %v2393, 3
        %v2396 = vor.u32 %v2392, %v2395
        %v2397 = vsel %vm2317, %v2387, %v2396
        %v2399 = vshrl.u32 %v2072, 16
        %v2401 = vrot.slane %v2399, 2
        %v2402 = vshll.u32 %v2072, 16
        %v2404 = vrot.slane %v2402, 3
        %v2405 = vor.u32 %v2401, %v2404
        %v2406 = vsel %vm2317, %v2396, %v2405
        %v2408 = vshrl.u32 %v2073, 16
        %v2410 = vrot.slane %v2408, 2
        %v2411 = vshll.u32 %v2073, 16
        %v2413 = vrot.slane %v2411, 3
        %v2414 = vor.u32 %v2410, %v2413
        %v2415 = vsel %vm2317, %v2405, %v2414
        %v2417 = vshrl.u32 %v2074, 16
        %v2419 = vrot.slane %v2417, 2
        %v2420 = vshll.u32 %v2074, 16
        %v2422 = vrot.slane %v2420, 3
        %v2423 = vor.u32 %v2419, %v2422
        %v2424 = vsel %vm2317, %v2414, %v2423
        %v2426 = vshrl.u32 %v2075, 16
        %v2428 = vrot.slane %v2426, 2
        %v2429 = vshll.u32 %v2075, 16
        %v2431 = vrot.slane %v2429, 3
        %v2432 = vor.u32 %v2428, %v2431
        %v2433 = vsel %vm2317, %v2423, %v2432
        %v2435 = vshrl.u32 %v2076, 16
        %v2437 = vrot.slane %v2435, 2
        %v2438 = vshll.u32 %v2076, 16
        %v2440 = vrot.slane %v2438, 3
        %v2441 = vor.u32 %v2437, %v2440
        %v2442 = vsel %vm2317, %v2432, %v2441
        %v2444 = vshrl.u32 %v2077, 16
        %v2446 = vrot.slane %v2444, 2
        %v2447 = vshll.u32 %v2077, 16
        %v2449 = vrot.slane %v2447, 3
        %v2450 = vor.u32 %v2446, %v2449
        %v2451 = vsel %vm2317, %v2441, %v2450
        %v2453 = vshrl.u32 %v2078, 16
        %v2455 = vrot.slane %v2453, 2
        %v2456 = vshll.u32 %v2078, 16
        %v2458 = vrot.slane %v2456, 3
        %v2459 = vor.u32 %v2455, %v2458
        %v2460 = vsel %vm2317, %v2450, %v2459
        %v2462 = vshrl.u32 %v2079, 16
        %v2464 = vrot.slane %v2462, 2
        %v2465 = vshll.u32 %v2079, 16
        %v2467 = vrot.slane %v2465, 3
        %v2468 = vor.u32 %v2464, %v2467
        %v2469 = vsel %vm2317, %v2459, %v2468
        %v2471 = vshrl.u32 %v2080, 16
        %v2473 = vrot.slane %v2471, 2
        %v2474 = vshll.u32 %v2080, 16
        %v2476 = vrot.slane %v2474, 3
        %v2477 = vor.u32 %v2473, %v2476
        %v2478 = vsel %vm2317, %v2468, %v2477
        %v2480 = vshrl.u32 %v2316, 16
        %v2482 = vrot.slane %v2480, 2
        %v2483 = vshll.u32 %v2316, 16
        %v2485 = vrot.slane %v2483, 3
        %v2486 = vor.u32 %v2482, %v2485
        %v2487 = vsel %vm2317, %v2477, %v2486
        %v2489 = vsel %vm452, %v2334, 0
        %v2492 = vsel %vm452, %v2343, 0
        %v2495 = vsel %vm452, %v2352, 0
        %v2498 = vsel %vm452, %v2361, 0
        %v2501 = vsel %vm452, %v2370, 0
        %v2504 = vsel %vm452, %v2379, 0
        %v2507 = vsel %vm452, %v2388, 0
        %v2510 = vsel %vm452, %v2397, 0
        %v2513 = vsel %vm452, %v2406, 0
        %v2516 = vsel %vm452, %v2415, 0
        %v2519 = vsel %vm452, %v2424, 0
        %v2522 = vsel %vm452, %v2433, 0
        %v2525 = vsel %vm452, %v2442, 0
        %v2528 = vsel %vm452, %v2451, 0
        %v2531 = vsel %vm452, %v2460, 0
        %v2534 = vsel %vm452, %v2469, 0
        %v2537 = vsel %vm452, %v2478, 0
        %v2540 = vsel %vm452, %v2487, 0
        %v2543 = vsel %vm507, %v2313, 0
        %2545 = vmatpush.bf16.msra.mxu0 0
        %2546 = vmatpush.bf16.msra.mxu0 0
        %2547 = vmatpush.bf16.msra.mxu0 0
        %2548 = vmatpush.bf16.msra.mxu0 0
        %2549 = vmatpush.bf16.msra.mxu0 0
        %2550 = vmatpush.bf16.msra.mxu0 0
        %2551 = vmatpush.bf16.msra.mxu0 0
        %2552 = vmatpush.bf16.msra.mxu0 %v2543
        %2553 = vmatmul.bf16.gmra.mxu0 %v2489
        %v2554 = vpop.f32.mrf.mxu0
        %v2555 = vadd.f32 0.0, %v2554
        %v2556 = vpop.f32.mrf.mxu0
        %v2557 = vadd.f32 0.0, %v2556
        %2558 = vmatmul.bf16.gmra.mxu0 %v2492
        %v2559 = vpop.f32.mrf.mxu0
        %v2560 = vadd.f32 0.0, %v2559
        %v2561 = vpop.f32.mrf.mxu0
        %v2562 = vadd.f32 0.0, %v2561
        %2563 = vmatmul.bf16.gmra.mxu0 %v2495
        %v2564 = vpop.f32.mrf.mxu0
        %v2565 = vadd.f32 0.0, %v2564
        %v2566 = vpop.f32.mrf.mxu0
        %v2567 = vadd.f32 0.0, %v2566
        %2568 = vmatmul.bf16.gmra.mxu0 %v2498
        %v2569 = vpop.f32.mrf.mxu0
        %v2570 = vadd.f32 0.0, %v2569
        %v2571 = vpop.f32.mrf.mxu0
        %v2572 = vadd.f32 0.0, %v2571
        %2573 = vmatmul.bf16.gmra.mxu0 %v2501
        %v2574 = vpop.f32.mrf.mxu0
        %v2575 = vadd.f32 0.0, %v2574
        %v2576 = vpop.f32.mrf.mxu0
        %v2577 = vadd.f32 0.0, %v2576
        %2578 = vmatmul.bf16.gmra.mxu0 %v2504
        %v2579 = vpop.f32.mrf.mxu0
        %v2580 = vadd.f32 0.0, %v2579
        %v2581 = vpop.f32.mrf.mxu0
        %v2582 = vadd.f32 0.0, %v2581
        %2583 = vmatmul.bf16.gmra.mxu0 %v2507
        %v2584 = vpop.f32.mrf.mxu0
        %v2585 = vadd.f32 0.0, %v2584
        %v2586 = vpop.f32.mrf.mxu0
        %v2587 = vadd.f32 0.0, %v2586
        %2588 = vmatmul.bf16.gmra.mxu0 %v2510
        %v2589 = vpop.f32.mrf.mxu0
        %v2590 = vadd.f32 0.0, %v2589
        %v2591 = vpop.f32.mrf.mxu0
        %v2592 = vadd.f32 0.0, %v2591
        %2593 = vmatmul.bf16.gmra.mxu0 %v2513
        %v2594 = vpop.f32.mrf.mxu0
        %v2595 = vadd.f32 0.0, %v2594
        %v2596 = vpop.f32.mrf.mxu0
        %v2597 = vadd.f32 0.0, %v2596
        %2598 = vmatmul.bf16.gmra.mxu0 %v2516
        %v2599 = vpop.f32.mrf.mxu0
        %v2600 = vadd.f32 0.0, %v2599
        %v2601 = vpop.f32.mrf.mxu0
        %v2602 = vadd.f32 0.0, %v2601
        %2603 = vmatmul.bf16.gmra.mxu0 %v2519
        %v2604 = vpop.f32.mrf.mxu0
        %v2605 = vadd.f32 0.0, %v2604
        %v2606 = vpop.f32.mrf.mxu0
        %v2607 = vadd.f32 0.0, %v2606
        %2608 = vmatmul.bf16.gmra.mxu0 %v2522
        %v2609 = vpop.f32.mrf.mxu0
        %v2610 = vadd.f32 0.0, %v2609
        %v2611 = vpop.f32.mrf.mxu0
        %v2612 = vadd.f32 0.0, %v2611
        %2613 = vmatmul.bf16.gmra.mxu0 %v2525
        %v2614 = vpop.f32.mrf.mxu0
        %v2615 = vadd.f32 0.0, %v2614
        %v2616 = vpop.f32.mrf.mxu0
        %v2617 = vadd.f32 0.0, %v2616
        %2618 = vmatmul.bf16.gmra.mxu0 %v2528
        %v2619 = vpop.f32.mrf.mxu0
        %v2620 = vadd.f32 0.0, %v2619
        %v2621 = vpop.f32.mrf.mxu0
        %v2622 = vadd.f32 0.0, %v2621
        %2623 = vmatmul.bf16.gmra.mxu0 %v2531
        %v2624 = vpop.f32.mrf.mxu0
        %v2625 = vadd.f32 0.0, %v2624
        %v2626 = vpop.f32.mrf.mxu0
        %v2627 = vadd.f32 0.0, %v2626
        %2628 = vmatmul.bf16.gmra.mxu0 %v2534
        %v2629 = vpop.f32.mrf.mxu0
        %v2630 = vadd.f32 0.0, %v2629
        %v2631 = vpop.f32.mrf.mxu0
        %v2632 = vadd.f32 0.0, %v2631
        %2633 = vmatmul.bf16.gmra.mxu0 %v2537
        %v2634 = vpop.f32.mrf.mxu0
        %v2635 = vadd.f32 0.0, %v2634
        %v2636 = vpop.f32.mrf.mxu0
        %v2637 = vadd.f32 0.0, %v2636
        %2638 = vmatmul.bf16.gmra.mxu0 %v2540
        %v2639 = vpop.f32.mrf.mxu0
        %v2640 = vadd.f32 0.0, %v2639
        %v2641 = vpop.f32.mrf.mxu0
        %v2642 = vadd.f32 0.0, %v2641
        %2643 = vdwg.mxu0
        %v2644 = vadd.f32 %v2275, %v2555
        %v2645 = vadd.f32 %v2276, %v2557
        %v2646 = vadd.f32 %v2277, %v2560
        %v2647 = vadd.f32 %v2278, %v2562
        %v2648 = vadd.f32 %v2279, %v2565
        %v2649 = vadd.f32 %v2280, %v2567
        %v2650 = vadd.f32 %v2281, %v2570
        %v2651 = vadd.f32 %v2282, %v2572
        %v2652 = vadd.f32 %v2283, %v2575
        %v2653 = vadd.f32 %v2284, %v2577
        %v2654 = vadd.f32 %v2285, %v2580
        %v2655 = vadd.f32 %v2286, %v2582
        %v2656 = vadd.f32 %v2287, %v2585
        %v2657 = vadd.f32 %v2288, %v2587
        %v2658 = vadd.f32 %v2289, %v2590
        %v2659 = vadd.f32 %v2290, %v2592
        %v2660 = vadd.f32 %v2291, %v2595
        %v2661 = vadd.f32 %v2292, %v2597
        %v2662 = vadd.f32 %v2293, %v2600
        %v2663 = vadd.f32 %v2294, %v2602
        %v2664 = vadd.f32 %v2295, %v2605
        %v2665 = vadd.f32 %v2296, %v2607
        %v2666 = vadd.f32 %v2297, %v2610
        %v2667 = vadd.f32 %v2298, %v2612
        %v2668 = vadd.f32 %v2299, %v2615
        %v2669 = vadd.f32 %v2300, %v2617
        %v2670 = vadd.f32 %v2301, %v2620
        %v2671 = vadd.f32 %v2302, %v2622
        %v2672 = vadd.f32 %v2303, %v2625
        %v2673 = vadd.f32 %v2304, %v2627
        %v2674 = vadd.f32 %v2305, %v2630
        %v2675 = vadd.f32 %v2306, %v2632
        %v2676 = vadd.f32 %v2307, %v2635
        %v2677 = vadd.f32 %v2308, %v2637
        %v2678 = vadd.f32 %v2309, %v2640
        %v2679 = vadd.f32 %v2310, %v2642
        %v2680 = vld [vmem:[%s168 + $0x10] sm:$0x8]
        %s2681 = scalar_lea.vmem %s1, 16
        %v2682 = vld [vmem:[%s2681] sm:$0x3]
        %v2684 = vunpack.c.l.b16 %v2680
        %v2685 = vpack.c.b16 %v2027, %v2684
        %vm2686 = vcmask 1044480
        %v2687 = vrot.slane %v2685, 3
        %v2688 = vrot.slane %v2064, 3
        %v2689 = vsel %vm2686, %v2687, %v2688
        %v2690 = vrot.slane %v2065, 3
        %v2691 = vsel %vm2686, %v2688, %v2690
        %v2692 = vrot.slane %v2066, 3
        %v2693 = vsel %vm2686, %v2690, %v2692
        %v2694 = vrot.slane %v2067, 3
        %v2695 = vsel %vm2686, %v2692, %v2694
        %v2696 = vrot.slane %v2068, 3
        %v2697 = vsel %vm2686, %v2694, %v2696
        %v2698 = vrot.slane %v2069, 3
        %v2699 = vsel %vm2686, %v2696, %v2698
        %v2700 = vrot.slane %v2070, 3
        %v2701 = vsel %vm2686, %v2698, %v2700
        %v2702 = vrot.slane %v2071, 3
        %v2703 = vsel %vm2686, %v2700, %v2702
        %v2704 = vrot.slane %v2072, 3
        %v2705 = vsel %vm2686, %v2702, %v2704
        %v2706 = vrot.slane %v2073, 3
        %v2707 = vsel %vm2686, %v2704, %v2706
        %v2708 = vrot.slane %v2074, 3
        %v2709 = vsel %vm2686, %v2706, %v2708
        %v2710 = vrot.slane %v2075, 3
        %v2711 = vsel %vm2686, %v2708, %v2710
        %v2712 = vrot.slane %v2076, 3
        %v2713 = vsel %vm2686, %v2710, %v2712
        %v2714 = vrot.slane %v2077, 3
        %v2715 = vsel %vm2686, %v2712, %v2714
        %v2716 = vrot.slane %v2078, 3
        %v2717 = vsel %vm2686, %v2714, %v2716
        %v2718 = vrot.slane %v2079, 3
        %v2719 = vsel %vm2686, %v2716, %v2718
        %v2720 = vrot.slane %v2080, 3
        %v2721 = vsel %vm2686, %v2718, %v2720
        %v2722 = vrot.slane %v2316, 3
        %v2723 = vsel %vm2686, %v2720, %v2722
        %v2725 = vsel %vm452, %v2689, 0
        %v2728 = vsel %vm452, %v2691, 0
        %v2731 = vsel %vm452, %v2693, 0
        %v2734 = vsel %vm452, %v2695, 0
        %v2737 = vsel %vm452, %v2697, 0
        %v2740 = vsel %vm452, %v2699, 0
        %v2743 = vsel %vm452, %v2701, 0
        %v2746 = vsel %vm452, %v2703, 0
        %v2749 = vsel %vm452, %v2705, 0
        %v2752 = vsel %vm452, %v2707, 0
        %v2755 = vsel %vm452, %v2709, 0
        %v2758 = vsel %vm452, %v2711, 0
        %v2761 = vsel %vm452, %v2713, 0
        %v2764 = vsel %vm452, %v2715, 0
        %v2767 = vsel %vm452, %v2717, 0
        %v2770 = vsel %vm452, %v2719, 0
        %v2773 = vsel %vm452, %v2721, 0
        %v2776 = vsel %vm452, %v2723, 0
        %v2779 = vsel %vm507, %v2682, 0
        %2781 = vmatpush.bf16.msra.mxu0 0
        %2782 = vmatpush.bf16.msra.mxu0 0
        %2783 = vmatpush.bf16.msra.mxu0 0
        %2784 = vmatpush.bf16.msra.mxu0 0
        %2785 = vmatpush.bf16.msra.mxu0 0
        %2786 = vmatpush.bf16.msra.mxu0 0
        %2787 = vmatpush.bf16.msra.mxu0 0
        %2788 = vmatpush.bf16.msra.mxu0 %v2779
        %2789 = vmatmul.bf16.gmra.mxu0 %v2725
        %v2790 = vpop.f32.mrf.mxu0
        %v2791 = vadd.f32 0.0, %v2790
        %v2792 = vpop.f32.mrf.mxu0
        %v2793 = vadd.f32 0.0, %v2792
        %2794 = vmatmul.bf16.gmra.mxu0 %v2728
        %v2795 = vpop.f32.mrf.mxu0
        %v2796 = vadd.f32 0.0, %v2795
        %v2797 = vpop.f32.mrf.mxu0
        %v2798 = vadd.f32 0.0, %v2797
        %2799 = vmatmul.bf16.gmra.mxu0 %v2731
        %v2800 = vpop.f32.mrf.mxu0
        %v2801 = vadd.f32 0.0, %v2800
        %v2802 = vpop.f32.mrf.mxu0
        %v2803 = vadd.f32 0.0, %v2802
        %2804 = vmatmul.bf16.gmra.mxu0 %v2734
        %v2805 = vpop.f32.mrf.mxu0
        %v2806 = vadd.f32 0.0, %v2805
        %v2807 = vpop.f32.mrf.mxu0
        %v2808 = vadd.f32 0.0, %v2807
        %2809 = vmatmul.bf16.gmra.mxu0 %v2737
        %v2810 = vpop.f32.mrf.mxu0
        %v2811 = vadd.f32 0.0, %v2810
        %v2812 = vpop.f32.mrf.mxu0
        %v2813 = vadd.f32 0.0, %v2812
        %2814 = vmatmul.bf16.gmra.mxu0 %v2740
        %v2815 = vpop.f32.mrf.mxu0
        %v2816 = vadd.f32 0.0, %v2815
        %v2817 = vpop.f32.mrf.mxu0
        %v2818 = vadd.f32 0.0, %v2817
        %2819 = vmatmul.bf16.gmra.mxu0 %v2743
        %v2820 = vpop.f32.mrf.mxu0
        %v2821 = vadd.f32 0.0, %v2820
        %v2822 = vpop.f32.mrf.mxu0
        %v2823 = vadd.f32 0.0, %v2822
        %2824 = vmatmul.bf16.gmra.mxu0 %v2746
        %v2825 = vpop.f32.mrf.mxu0
        %v2826 = vadd.f32 0.0, %v2825
        %v2827 = vpop.f32.mrf.mxu0
        %v2828 = vadd.f32 0.0, %v2827
        %2829 = vmatmul.bf16.gmra.mxu0 %v2749
        %v2830 = vpop.f32.mrf.mxu0
        %v2831 = vadd.f32 0.0, %v2830
        %v2832 = vpop.f32.mrf.mxu0
        %v2833 = vadd.f32 0.0, %v2832
        %2834 = vmatmul.bf16.gmra.mxu0 %v2752
        %v2835 = vpop.f32.mrf.mxu0
        %v2836 = vadd.f32 0.0, %v2835
        %v2837 = vpop.f32.mrf.mxu0
        %v2838 = vadd.f32 0.0, %v2837
        %2839 = vmatmul.bf16.gmra.mxu0 %v2755
        %v2840 = vpop.f32.mrf.mxu0
        %v2841 = vadd.f32 0.0, %v2840
        %v2842 = vpop.f32.mrf.mxu0
        %v2843 = vadd.f32 0.0, %v2842
        %2844 = vmatmul.bf16.gmra.mxu0 %v2758
        %v2845 = vpop.f32.mrf.mxu0
        %v2846 = vadd.f32 0.0, %v2845
        %v2847 = vpop.f32.mrf.mxu0
        %v2848 = vadd.f32 0.0, %v2847
        %2849 = vmatmul.bf16.gmra.mxu0 %v2761
        %v2850 = vpop.f32.mrf.mxu0
        %v2851 = vadd.f32 0.0, %v2850
        %v2852 = vpop.f32.mrf.mxu0
        %v2853 = vadd.f32 0.0, %v2852
        %2854 = vmatmul.bf16.gmra.mxu0 %v2764
        %v2855 = vpop.f32.mrf.mxu0
        %v2856 = vadd.f32 0.0, %v2855
        %v2857 = vpop.f32.mrf.mxu0
        %v2858 = vadd.f32 0.0, %v2857
        %2859 = vmatmul.bf16.gmra.mxu0 %v2767
        %v2860 = vpop.f32.mrf.mxu0
        %v2861 = vadd.f32 0.0, %v2860
        %v2862 = vpop.f32.mrf.mxu0
        %v2863 = vadd.f32 0.0, %v2862
        %2864 = vmatmul.bf16.gmra.mxu0 %v2770
        %v2865 = vpop.f32.mrf.mxu0
        %v2866 = vadd.f32 0.0, %v2865
        %v2867 = vpop.f32.mrf.mxu0
        %v2868 = vadd.f32 0.0, %v2867
        %2869 = vmatmul.bf16.gmra.mxu0 %v2773
        %v2870 = vpop.f32.mrf.mxu0
        %v2871 = vadd.f32 0.0, %v2870
        %v2872 = vpop.f32.mrf.mxu0
        %v2873 = vadd.f32 0.0, %v2872
        %2874 = vmatmul.bf16.gmra.mxu0 %v2776
        %v2875 = vpop.f32.mrf.mxu0
        %v2876 = vadd.f32 0.0, %v2875
        %v2877 = vpop.f32.mrf.mxu0
        %v2878 = vadd.f32 0.0, %v2877
        %2879 = vdwg.mxu0
        %v2880 = vadd.f32 %v2644, %v2791
        %v2881 = vadd.f32 %v2645, %v2793
        %v2882 = vadd.f32 %v2646, %v2796
        %v2883 = vadd.f32 %v2647, %v2798
        %v2884 = vadd.f32 %v2648, %v2801
        %v2885 = vadd.f32 %v2649, %v2803
        %v2886 = vadd.f32 %v2650, %v2806
        %v2887 = vadd.f32 %v2651, %v2808
        %v2888 = vadd.f32 %v2652, %v2811
        %v2889 = vadd.f32 %v2653, %v2813
        %v2890 = vadd.f32 %v2654, %v2816
        %v2891 = vadd.f32 %v2655, %v2818
        %v2892 = vadd.f32 %v2656, %v2821
        %v2893 = vadd.f32 %v2657, %v2823
        %v2894 = vadd.f32 %v2658, %v2826
        %v2895 = vadd.f32 %v2659, %v2828
        %v2896 = vadd.f32 %v2660, %v2831
        %v2897 = vadd.f32 %v2661, %v2833
        %v2898 = vadd.f32 %v2662, %v2836
        %v2899 = vadd.f32 %v2663, %v2838
        %v2900 = vadd.f32 %v2664, %v2841
        %v2901 = vadd.f32 %v2665, %v2843
        %v2902 = vadd.f32 %v2666, %v2846
        %v2903 = vadd.f32 %v2667, %v2848
        %v2904 = vadd.f32 %v2668, %v2851
        %v2905 = vadd.f32 %v2669, %v2853
        %v2906 = vadd.f32 %v2670, %v2856
        %v2907 = vadd.f32 %v2671, %v2858
        %v2908 = vadd.f32 %v2672, %v2861
        %v2909 = vadd.f32 %v2673, %v2863
        %v2910 = vadd.f32 %v2674, %v2866
        %v2911 = vadd.f32 %v2675, %v2868
        %v2912 = vadd.f32 %v2676, %v2871
        %v2913 = vadd.f32 %v2677, %v2873
        %v2914 = vadd.f32 %v2678, %v2876
        %v2915 = vadd.f32 %v2679, %v2878
        %v2916 = vld [vmem:[%s2] sm:$0x1]
        %v2918 = vperm.slane %v2916, 0
        %v2920 = vadd.f32 %v2880, %v2918
        %v2921 = vadd.f32 %v2881, %v2918
        %v2922 = vadd.f32 %v2882, %v2918
        %v2923 = vadd.f32 %v2883, %v2918
        %v2924 = vadd.f32 %v2884, %v2918
        %v2925 = vadd.f32 %v2885, %v2918
        %v2926 = vadd.f32 %v2886, %v2918
        %v2927 = vadd.f32 %v2887, %v2918
        %v2928 = vadd.f32 %v2888, %v2918
        %v2929 = vadd.f32 %v2889, %v2918
        %v2930 = vadd.f32 %v2890, %v2918
        %v2931 = vadd.f32 %v2891, %v2918
        %v2932 = vadd.f32 %v2892, %v2918
        %v2933 = vadd.f32 %v2893, %v2918
        %v2934 = vadd.f32 %v2894, %v2918
        %v2935 = vadd.f32 %v2895, %v2918
        %v2936 = vadd.f32 %v2896, %v2918
        %v2937 = vadd.f32 %v2897, %v2918
        %v2938 = vadd.f32 %v2898, %v2918
        %v2939 = vadd.f32 %v2899, %v2918
        %v2940 = vadd.f32 %v2900, %v2918
        %v2941 = vadd.f32 %v2901, %v2918
        %v2942 = vadd.f32 %v2902, %v2918
        %v2943 = vadd.f32 %v2903, %v2918
        %v2944 = vadd.f32 %v2904, %v2918
        %v2945 = vadd.f32 %v2905, %v2918
        %v2946 = vadd.f32 %v2906, %v2918
        %v2947 = vadd.f32 %v2907, %v2918
        %v2948 = vadd.f32 %v2908, %v2918
        %v2949 = vadd.f32 %v2909, %v2918
        %v2950 = vadd.f32 %v2910, %v2918
        %v2951 = vadd.f32 %v2911, %v2918
        %v2952 = vadd.f32 %v2912, %v2918
        %v2953 = vadd.f32 %v2913, %v2918
        %v2954 = vadd.f32 %v2914, %v2918
        %v2955 = vadd.f32 %v2915, %v2918
        %vm2956 = vcmp.ge.f32.partialorder %v2920, 0.0
        %vm2957 = vcmp.ge.f32.partialorder %v2921, 0.0
        %vm2958 = vcmp.ge.f32.partialorder %v2922, 0.0
        %vm2959 = vcmp.ge.f32.partialorder %v2923, 0.0
        %vm2960 = vcmp.ge.f32.partialorder %v2924, 0.0
        %vm2961 = vcmp.ge.f32.partialorder %v2925, 0.0
        %vm2962 = vcmp.ge.f32.partialorder %v2926, 0.0
        %vm2963 = vcmp.ge.f32.partialorder %v2927, 0.0
        %vm2964 = vcmp.ge.f32.partialorder %v2928, 0.0
        %vm2965 = vcmp.ge.f32.partialorder %v2929, 0.0
        %vm2966 = vcmp.ge.f32.partialorder %v2930, 0.0
        %vm2967 = vcmp.ge.f32.partialorder %v2931, 0.0
        %vm2968 = vcmp.ge.f32.partialorder %v2932, 0.0
        %vm2969 = vcmp.ge.f32.partialorder %v2933, 0.0
        %vm2970 = vcmp.ge.f32.partialorder %v2934, 0.0
        %vm2971 = vcmp.ge.f32.partialorder %v2935, 0.0
        %vm2972 = vcmp.ge.f32.partialorder %v2936, 0.0
        %vm2973 = vcmp.ge.f32.partialorder %v2937, 0.0
        %vm2974 = vcmp.ge.f32.partialorder %v2938, 0.0
        %vm2975 = vcmp.ge.f32.partialorder %v2939, 0.0
        %vm2976 = vcmp.ge.f32.partialorder %v2940, 0.0
        %vm2977 = vcmp.ge.f32.partialorder %v2941, 0.0
        %vm2978 = vcmp.ge.f32.partialorder %v2942, 0.0
        %vm2979 = vcmp.ge.f32.partialorder %v2943, 0.0
        %vm2980 = vcmp.ge.f32.partialorder %v2944, 0.0
        %vm2981 = vcmp.ge.f32.partialorder %v2945, 0.0
        %vm2982 = vcmp.ge.f32.partialorder %v2946, 0.0
        %vm2983 = vcmp.ge.f32.partialorder %v2947, 0.0
        %vm2984 = vcmp.ge.f32.partialorder %v2948, 0.0
        %vm2985 = vcmp.ge.f32.partialorder %v2949, 0.0
        %vm2986 = vcmp.ge.f32.partialorder %v2950, 0.0
        %vm2987 = vcmp.ge.f32.partialorder %v2951, 0.0
        %vm2988 = vcmp.ge.f32.partialorder %v2952, 0.0
        %vm2989 = vcmp.ge.f32.partialorder %v2953, 0.0
        %vm2990 = vcmp.ge.f32.partialorder %v2954, 0.0
        %vm2991 = vcmp.ge.f32.partialorder %v2955, 0.0
        %v2992 = vmul.f32 %v2920, 0.2
        %v2993 = vmul.f32 %v2921, 0.2
        %v2994 = vmul.f32 %v2922, 0.2
        %v2995 = vmul.f32 %v2923, 0.2
        %v2996 = vmul.f32 %v2924, 0.2
        %v2997 = vmul.f32 %v2925, 0.2
        %v2998 = vmul.f32 %v2926, 0.2
        %v2999 = vmul.f32 %v2927, 0.2
        %v3000 = vmul.f32 %v2928, 0.2
        %v3001 = vmul.f32 %v2929, 0.2
        %v3002 = vmul.f32 %v2930, 0.2
        %v3003 = vmul.f32 %v2931, 0.2
        %v3004 = vmul.f32 %v2932, 0.2
        %v3005 = vmul.f32 %v2933, 0.2
        %v3006 = vmul.f32 %v2934, 0.2
        %v3007 = vmul.f32 %v2935, 0.2
        %v3008 = vmul.f32 %v2936, 0.2
        %v3009 = vmul.f32 %v2937, 0.2
        %v3010 = vmul.f32 %v2938, 0.2
        %v3011 = vmul.f32 %v2939, 0.2
        %v3012 = vmul.f32 %v2940, 0.2
        %v3013 = vmul.f32 %v2941, 0.2
        %v3014 = vmul.f32 %v2942, 0.2
        %v3015 = vmul.f32 %v2943, 0.2
        %v3016 = vmul.f32 %v2944, 0.2
        %v3017 = vmul.f32 %v2945, 0.2
        %v3018 = vmul.f32 %v2946, 0.2
        %v3019 = vmul.f32 %v2947, 0.2
        %v3020 = vmul.f32 %v2948, 0.2
        %v3021 = vmul.f32 %v2949, 0.2
        %v3022 = vmul.f32 %v2950, 0.2
        %v3023 = vmul.f32 %v2951, 0.2
        %v3024 = vmul.f32 %v2952, 0.2
        %v3025 = vmul.f32 %v2953, 0.2
        %v3026 = vmul.f32 %v2954, 0.2
        %v3027 = vmul.f32 %v2955, 0.2
        %v3028 = vsel %vm2956, %v2920, %v2992
        %v3029 = vsel %vm2957, %v2921, %v2993
        %v3030 = vsel %vm2958, %v2922, %v2994
        %v3031 = vsel %vm2959, %v2923, %v2995
        %v3032 = vsel %vm2960, %v2924, %v2996
        %v3033 = vsel %vm2961, %v2925, %v2997
        %v3034 = vsel %vm2962, %v2926, %v2998
        %v3035 = vsel %vm2963, %v2927, %v2999
        %v3036 = vsel %vm2964, %v2928, %v3000
        %v3037 = vsel %vm2965, %v2929, %v3001
        %v3038 = vsel %vm2966, %v2930, %v3002
        %v3039 = vsel %vm2967, %v2931, %v3003
        %v3040 = vsel %vm2968, %v2932, %v3004
        %v3041 = vsel %vm2969, %v2933, %v3005
        %v3042 = vsel %vm2970, %v2934, %v3006
        %v3043 = vsel %vm2971, %v2935, %v3007
        %v3044 = vsel %vm2972, %v2936, %v3008
        %v3045 = vsel %vm2973, %v2937, %v3009
        %v3046 = vsel %vm2974, %v2938, %v3010
        %v3047 = vsel %vm2975, %v2939, %v3011
        %v3048 = vsel %vm2976, %v2940, %v3012
        %v3049 = vsel %vm2977, %v2941, %v3013
        %v3050 = vsel %vm2978, %v2942, %v3014
        %v3051 = vsel %vm2979, %v2943, %v3015
        %v3052 = vsel %vm2980, %v2944, %v3016
        %v3053 = vsel %vm2981, %v2945, %v3017
        %v3054 = vsel %vm2982, %v2946, %v3018
        %v3055 = vsel %vm2983, %v2947, %v3019
        %v3056 = vsel %vm2984, %v2948, %v3020
        %v3057 = vsel %vm2985, %v2949, %v3021
        %v3058 = vsel %vm2986, %v2950, %v3022
        %v3059 = vsel %vm2987, %v2951, %v3023
        %v3060 = vsel %vm2988, %v2952, %v3024
        %v3061 = vsel %vm2989, %v2953, %v3025
        %v3062 = vsel %vm2990, %v2954, %v3026
        %v3063 = vsel %vm2991, %v2955, %v3027
        %3064 = vst [vmem:[%s163] sm:$0xff] %v3028
        %3065 = vst [vmem:[%s163 + $0x8] sm:$0xff] %v3029
        %3066 = vst [vmem:[%s163 + $0x10] sm:$0xff] %v3030
        %3067 = vst [vmem:[%s163 + $0x18] sm:$0xff] %v3031
        %3068 = vst [vmem:[%s163 + $0x20] sm:$0xff] %v3032
        %3069 = vst [vmem:[%s163 + $0x28] sm:$0xff] %v3033
        %3070 = vst [vmem:[%s163 + $0x30] sm:$0xff] %v3034
        %3071 = vst [vmem:[%s163 + $0x38] sm:$0xff] %v3035
        %3072 = vst [vmem:[%s163 + $0x40] sm:$0xff] %v3036
        %3073 = vst [vmem:[%s163 + $0x48] sm:$0xff] %v3037
        %3074 = vst [vmem:[%s163 + $0x50] sm:$0xff] %v3038
        %3075 = vst [vmem:[%s163 + $0x58] sm:$0xff] %v3039
        %3076 = vst [vmem:[%s163 + $0x60] sm:$0xff] %v3040
        %3077 = vst [vmem:[%s163 + $0x68] sm:$0xff] %v3041
        %3078 = vst [vmem:[%s163 + $0x70] sm:$0xff] %v3042
        %3079 = vst [vmem:[%s163 + $0x78] sm:$0xff] %v3043
        %3080 = vst [vmem:[%s163 + $0x80] sm:$0xff] %v3044
        %3081 = vst [vmem:[%s163 + $0x88] sm:$0xff] %v3045
        %3082 = vst [vmem:[%s163 + $0x90] sm:$0xff] %v3046
        %3083 = vst [vmem:[%s163 + $0x98] sm:$0xff] %v3047
        %3084 = vst [vmem:[%s163 + $0xa0] sm:$0xff] %v3048
        %3085 = vst [vmem:[%s163 + $0xa8] sm:$0xff] %v3049
        %3086 = vst [vmem:[%s163 + $0xb0] sm:$0xff] %v3050
        %3087 = vst [vmem:[%s163 + $0xb8] sm:$0xff] %v3051
        %3088 = vst [vmem:[%s163 + $0xc0] sm:$0xff] %v3052
        %3089 = vst [vmem:[%s163 + $0xc8] sm:$0xff] %v3053
        %3090 = vst [vmem:[%s163 + $0xd0] sm:$0xff] %v3054
        %3091 = vst [vmem:[%s163 + $0xd8] sm:$0xff] %v3055
        %3092 = vst [vmem:[%s163 + $0xe0] sm:$0xff] %v3056
        %3093 = vst [vmem:[%s163 + $0xe8] sm:$0xff] %v3057
        %3094 = vst [vmem:[%s163 + $0xf0] sm:$0xff] %v3058
        %3095 = vst [vmem:[%s163 + $0xf8] sm:$0xff] %v3059
        %3096 = vst [vmem:[%s163 + $0x100] sm:$0xff] %v3060
        %3097 = vst [vmem:[%s163 + $0x108] sm:$0xff] %v3061
        %3098 = vst [vmem:[%s163 + $0x110] sm:$0xff] %v3062
        %3099 = vst [vmem:[%s163 + $0x118] sm:$0xff] %v3063
        %s3100 = sand.u32 %s93, 1
        %s3101 = scalar_lea.sflag [#allocation3], %s3100
        %s3102 = sand.u32 %s93, 1
        %s3103 = smul.addr %s3102, 288
        %s3104 = scalar_lea.vmem [#allocation2], %s3103
        // Predicated region
        $region33: #{tpu_custom_call.1} parent=31 // pred_check
          %p3105 = pneg %p103
        $region34: #{tpu_custom_call.1} parent=31 // pred_check_branch
          %3107 = sbr.rel (%p3105) target = $region36
        $region35: #{tpu_custom_call.1} parent=31 // pred_region
          %3109 = vsyncadd %s3101, 0
          %s3110 = smul.addr %s17, 36
          %s3111 = smul.addr %s3110, 8
          %s3112 = scalar_lea.hbm %s3, %s3111
          %s3113 = sshll.u32 %s3104, 4
          %s3114 = int_to_ptr.vmem [resolvable:$true] %s3113
          %s3115 = sshll.u32 %s3112, 4
          %s3116 = int_to_ptr.hbm [resolvable:$true] %s3115
          %3121 = dma.vmem_to_hbm [thread:$0]  %s3114, 4608, %s3116, %s3101, 128, 128, 8
        $region36: #{tpu_custom_call.1} parent=31 // pred_fallthru
          _
      $region32: #{tpu_custom_call.1} parent=5 // pred_fallthru
        _
      %p3122 = scmp.le.s32.totalorder 2, %s12
      // Predicated region
      $region37: #{tpu_custom_call.1} parent=5 // pred_check
        %p3123 = pneg %p3122
      $region38: #{tpu_custom_call.1} parent=5 // pred_check_branch
        %3125 = sbr.rel (%p3123) target = $region40
      $region39: #{tpu_custom_call.1} parent=5 // pred_region
        %s3126 = ssub.s32 %s12, 2
        // Predicated region
        $region41: #{tpu_custom_call.1} parent=39 // pred_check
          %p3127 = pneg %p109
        $region42: #{tpu_custom_call.1} parent=39 // pred_check_branch
          %3129 = sbr.rel (%p3127) target = $region44
        $region43: #{tpu_custom_call.1} parent=39 // pred_region
          %s3130 = sand.u32 %s94, 1
          %s3131 = scalar_lea.sflag [#allocation3], %s3130
          %s3132 = sand.u32 %s94, 1
          %s3133 = smul.addr %s3132, 288
          %s3134 = scalar_lea.vmem [#allocation2], %s3133
          %3136 = dma.done %s3131, 4608
        $region44: #{tpu_custom_call.1} parent=39 // pred_fallthru
          _
      $region40: #{tpu_custom_call.1} parent=5 // pred_fallthru
        _
    $region6: #{tpu_custom_call.1} parent=1 // loop_footer
      %s16 = sadd.s32 1, %s12
    $region7: #{tpu_custom_call.1} parent=1 // loop_footer_branch
      %11 = sbr.rel target = $region3
    $region8: #{tpu_custom_call.1} parent=1 // loop_exit
      _
    %3137 = vsyncpa [#allocation3], 1
    %s3138 = scalar_lea.sflag [#allocation3], 1
    %3139 = vsyncpa %s3138, 1

</llo_original>
